<compile_context>
chip_gen: v6e
topology: v6e:2x2x1
jax: 0.10.0
libtpu: 0.0.40
codegen_flags: <defaults>
</compile_context>

<pallas_src>
import jax
import jax.numpy as jnp
from jax.experimental import pallas as pl
from jax.experimental.pallas import tpu as pltpu


def _einsum_kernel(a_ref, b_ref, o_ref):
    """(bB, M, J) x (bB, J, N) -> (bB, M, N) with tiny J as a VPU broadcast FMA.

    a_ref: v1 with its (22, 22) spatial dims flattened to M
    b_ref: x permuted to channel-major, spatial flattened to N
    o_ref: result
    """
    j_dim = a_ref.shape[-1]
    a = a_ref[...]                                  # (bB, M, J)
    b = b_ref[...]                                  # (bB, J, N)
    # J-term broadcast FMA: (bB,M,1)*(bB,1,N) -> (bB,M,N).  Avoids the MXU
    # whose contraction dim would be >98% padding for J = 2.
    acc = a[..., 0:1] * b[:, 0:1, :]
    for j in range(1, j_dim):                       # J = 2: static unroll
        acc = acc + a[..., j:j + 1] * b[:, j:j + 1, :]
    o_ref[...] = acc


def _shard_batch_over_cores() -> bool:
    """True only on chips with >1 TensorCore per pallas_call (v7x)."""
    try:
        kind = jax.devices()[0].device_kind
    except Exception:
        return False
    return "v7" in kind.lower()


# Decide the grid layout once at import/trace time (Python-level, not traced).
_MULTI_TC = _shard_batch_over_cores()


@jax.jit
def module_forward(v1, x):
    """v1: (3, 22, 22, 2) f32, x: (3, H, W, 2) f32 -> (3, 22, 22, H, W) f32."""
    B, A1, A2, J = v1.shape                         # (3, 22, 22, 2)
    Bx, H, W, Jx = x.shape
    assert B == Bx and J == Jx

    M = A1 * A2                                     # 484
    N = H * W

    a_mat = v1.reshape(B, M, J).astype(jnp.float32)
    # x.permute(0, 3, 1, 2) -> (B, J, H, W) -> (B, J, N).  x is tiny (a few
    # KB) and allow_input_fusion lets this fold into the pallas_call operand.
    b_mat = jnp.transpose(x, (0, 3, 1, 2)).reshape(B, J, N).astype(jnp.float32)

    cost = pl.CostEstimate(
        flops=2 * B * M * J * N,
        transcendentals=0,
        bytes_accessed=4 * (B * M * J + B * J * N + B * M * N),
    )

    if _MULTI_TC:
        # v7x: shard the batch axis over the 2 TensorCores -- the kernel is
        # HBM-writeback-bound (~1.5 MB out) so both DMA paths drain it.
        grid = (B,)
        bb = 1
        idx = lambda i: (i, 0, 0)
        sem = ("parallel",)
    else:
        # v5e / v6e: single TC, nothing to hide the writeback behind; one
        # step avoids per-step pipeline overhead.
        grid = (1,)
        bb = B
        idx = lambda i: (0, 0, 0)
        sem = ("arbitrary",)

    out = pl.pallas_call(
        _einsum_kernel,
        out_shape=jax.ShapeDtypeStruct((B, M, N), jnp.float32),
        grid_spec=pltpu.PrefetchScalarGridSpec(
            num_scalar_prefetch=0,
            grid=grid,
            in_specs=[
                pl.BlockSpec((bb, M, J), idx),
                pl.BlockSpec((bb, J, N), idx),
            ],
            out_specs=pl.BlockSpec((bb, M, N), idx),
        ),
        compiler_params=pltpu.CompilerParams(
            dimension_semantics=sem,
            vmem_limit_bytes=8 * 1024 * 1024,
            allow_input_fusion=[True, True],
        ),
        cost_estimate=cost,
    )(a_mat, b_mat)

    return out.reshape(B, A1, A2, H, W)


if __name__ == "__main__":
    key = jax.random.PRNGKey(0)
    k1, k2 = jax.random.split(key)

    # torch.randn(3, 22, 22, 2) from the module's forward, generated
    # deterministically here so the test is reproducible.
    v1 = jax.random.normal(k1, (3, 22, 22, 2), dtype=jnp.float32)
    # x must be (3, H, W, 2) so that permute(0, 3, 1, 2) gives (3, 2, H, W).
    x = jax.random.normal(k2, (3, 16, 16, 2), dtype=jnp.float32)

    out = jax.block_until_ready(module_forward(v1, x))

    # sanity check against pure-JAX reference of the module's forward
    v2 = jnp.transpose(x, (0, 3, 1, 2))
    ref = jnp.einsum('iabj,ijkl->iabkl', v1, v2)
    assert out.shape == (3, 22, 22, 16, 16)
    assert jnp.allclose(out, ref, atol=1e-5, rtol=1e-5)

    print("KERNEL_OK")
</pallas_src>

<mosaic_0001>
module attributes {stable_mosaic.version = 11 : i64} {
  func.func @_einsum_kernel(%arg0: i32, %arg1: memref<3x484x2xf32, #tpu.memory_space<vmem>>, %arg2: memref<3x2x256xf32, #tpu.memory_space<vmem>>, %arg3: memref<3x484x256xf32, #tpu.memory_space<vmem>>) attributes {dimension_semantics = [#tpu.dimension_semantics<arbitrary>], iteration_bounds = array<i64: 1>, scalar_prefetch = 0 : i64, scratch_operands = 0 : i64, tpu.core_type = #tpu.core_type<tc>, window_params = [{pipeline_mode = #tpu.pipeline_mode<synchronous>, transform_indices = @transform_0, window_bounds = array<i64: 3, 484, 2>}, {pipeline_mode = #tpu.pipeline_mode<synchronous>, transform_indices = @transform_1, window_bounds = array<i64: 3, 2, 256>}, {pipeline_mode = #tpu.pipeline_mode<synchronous>, transform_indices = @transform_2, window_bounds = array<i64: 3, 484, 256>}]} {
    %c0 = arith.constant 0 : index
    %c0_0 = arith.constant 0 : index
    %c0_1 = arith.constant 0 : index
    %0 = vector.load %arg1[%c0, %c0_0, %c0_1] : memref<3x484x2xf32, #tpu.memory_space<vmem>>, vector<3x484x2xf32>
    %c0_2 = arith.constant 0 : index
    %c0_3 = arith.constant 0 : index
    %c0_4 = arith.constant 0 : index
    %1 = vector.load %arg2[%c0_2, %c0_3, %c0_4] : memref<3x2x256xf32, #tpu.memory_space<vmem>>, vector<3x2x256xf32>
    %2 = vector.extract_strided_slice %0 {offsets = [0, 0, 0], sizes = [3, 484, 1], strides = [1, 1, 1]} : vector<3x484x2xf32> to vector<3x484x1xf32>
    %3 = vector.extract_strided_slice %1 {offsets = [0, 0, 0], sizes = [3, 1, 256], strides = [1, 1, 1]} : vector<3x2x256xf32> to vector<3x1x256xf32>
    %4 = vector.broadcast %2 : vector<3x484x1xf32> to vector<3x484x256xf32>
    %5 = vector.broadcast %3 : vector<3x1x256xf32> to vector<3x484x256xf32>
    %6 = arith.mulf %4, %5 : vector<3x484x256xf32>
    %7 = vector.extract_strided_slice %0 {offsets = [0, 0, 1], sizes = [3, 484, 1], strides = [1, 1, 1]} : vector<3x484x2xf32> to vector<3x484x1xf32>
    %8 = vector.extract_strided_slice %1 {offsets = [0, 1, 0], sizes = [3, 1, 256], strides = [1, 1, 1]} : vector<3x2x256xf32> to vector<3x1x256xf32>
    %9 = vector.broadcast %7 : vector<3x484x1xf32> to vector<3x484x256xf32>
    %10 = vector.broadcast %8 : vector<3x1x256xf32> to vector<3x484x256xf32>
    %11 = arith.mulf %9, %10 : vector<3x484x256xf32>
    %12 = arith.addf %6, %11 : vector<3x484x256xf32>
    %c0_5 = arith.constant 0 : index
    %c0_6 = arith.constant 0 : index
    %c0_7 = arith.constant 0 : index
    %13 = vector.load %arg3[%c0_5, %c0_6, %c0_7] : memref<3x484x256xf32, #tpu.memory_space<vmem>>, vector<3x484x256xf32>
    tpu.vector_store %arg3[%c0_5, %c0_6, %c0_7], %12 {strides = array<i32>} : memref<3x484x256xf32, #tpu.memory_space<vmem>>, vector<3x484x256xf32>,
    return
  }
  func.func @transform_0(%arg0: i32) -> (i32, i32, i32) {
    %c0_i32 = arith.constant 0 : i32
    %c0_i32_0 = arith.constant 0 : i32
    %c0_i32_1 = arith.constant 0 : i32
    %c0_i32_2 = arith.constant 0 : i32
    return %c0_i32, %c0_i32_0, %c0_i32_1 : i32, i32, i32
  }
  func.func @transform_1(%arg0: i32) -> (i32, i32, i32) {
    %c0_i32 = arith.constant 0 : i32
    %c0_i32_0 = arith.constant 0 : i32
    %c0_i32_1 = arith.constant 0 : i32
    %c0_i32_2 = arith.constant 0 : i32
    return %c0_i32, %c0_i32_0, %c0_i32_1 : i32, i32, i32
  }
  func.func @transform_2(%arg0: i32) -> (i32, i32, i32) {
    %c0_i32 = arith.constant 0 : i32
    %c0_i32_0 = arith.constant 0 : i32
    %c0_i32_1 = arith.constant 0 : i32
    %c0_i32_2 = arith.constant 0 : i32
    return %c0_i32, %c0_i32_0, %c0_i32_1 : i32, i32, i32
  }
}

</mosaic_0001>

<llo_original>
// kernel: module_forward.1
$region0: #{module_forward.1}
  #allocation0 [shape = 'u32[]', space=smem, size = 0x4, offset = 0x4, fixed_abs, tag = 'smem constant byte address 0x4 - core index']
  #allocation1 [shape = 'u32[144,128]{1,0:T(1,128)}', space=vmem, size = 0x12000, scoped, tag = 'internal scratch']
  %s0 = inlined_call_operand.vmem [shape: f32[3,484,2], index: 0, kind: input, shape index: {}]
  %s1 = inlined_call_operand.vmem [shape: f32[3,2,256], index: 1, kind: input, shape index: {}]
  %s2 = inlined_call_operand.vmem [shape: f32[3,484,256], index: 2, kind: output, shape index: {}]
  %s3 = sld [smem:[#allocation0]]
  $region18: #{module_forward.1} parent=0
    _
  %s5 = ssub.s32 1, %s3
  %s6 = scalar_select 0, %s5, %s3
  // Predicated region
  $region2: #{module_forward.1} parent=0 // pred_check
    _
  $region3: #{module_forward.1} parent=0 // pred_check_branch
    %8 = sbr.rel (0) target = $region5
  $region4: #{module_forward.1} parent=0 // pred_region
    _
  $region5: #{module_forward.1} parent=0 // pred_fallthru
    _
  // Predicated region
  $region6: #{module_forward.1} parent=0 // pred_check
    _
  $region7: #{module_forward.1} parent=0 // pred_check_branch
    %10 = sbr.rel (0) target = $region9
  $region8: #{module_forward.1} parent=0 // pred_region
    _
  $region9: #{module_forward.1} parent=0 // pred_fallthru
    _
  %v11 = vld [vmem:[%s0] sm:$0xff]
  %v12 = vld [vmem:[%s0 + $0x8] sm:$0xff]
  %v13 = vld [vmem:[%s0 + $0x10] sm:$0xff]
  %v14 = vld [vmem:[%s0 + $0x18] sm:$0xff]
  %v15 = vld [vmem:[%s0 + $0x20] sm:$0xff]
  %v16 = vld [vmem:[%s0 + $0x28] sm:$0xff]
  %v17 = vld [vmem:[%s0 + $0x30] sm:$0xff]
  %v18 = vld [vmem:[%s0 + $0x38] sm:$0xff]
  %v19 = vld [vmem:[%s0 + $0x40] sm:$0xff]
  %v20 = vld [vmem:[%s0 + $0x48] sm:$0xff]
  %v21 = vld [vmem:[%s0 + $0x50] sm:$0xff]
  %v22 = vld [vmem:[%s0 + $0x58] sm:$0xff]
  %v23 = vld [vmem:[%s0 + $0x60] sm:$0xff]
  %v24 = vld [vmem:[%s0 + $0x68] sm:$0xff]
  %v25 = vld [vmem:[%s0 + $0x70] sm:$0xff]
  %v26 = vld [vmem:[%s0 + $0x78] sm:$0xff]
  %v27 = vld [vmem:[%s0 + $0x80] sm:$0xff]
  %v28 = vld [vmem:[%s0 + $0x88] sm:$0xff]
  %v29 = vld [vmem:[%s0 + $0x90] sm:$0xff]
  %v30 = vld [vmem:[%s0 + $0x98] sm:$0xff]
  %v31 = vld [vmem:[%s0 + $0xa0] sm:$0xff]
  %v32 = vld [vmem:[%s0 + $0xa8] sm:$0xff]
  %v33 = vld [vmem:[%s0 + $0xb0] sm:$0xff]
  %v34 = vld [vmem:[%s0 + $0xb8] sm:$0xff]
  %v35 = vld [vmem:[%s0 + $0xc0] sm:$0xff]
  %v36 = vld [vmem:[%s0 + $0xc8] sm:$0xff]
  %v37 = vld [vmem:[%s0 + $0xd0] sm:$0xff]
  %v38 = vld [vmem:[%s0 + $0xd8] sm:$0xff]
  %v39 = vld [vmem:[%s0 + $0xe0] sm:$0xff]
  %v40 = vld [vmem:[%s0 + $0xe8] sm:$0xff]
  %v41 = vld [vmem:[%s0 + $0xf0] sm:$0xff]
  %v42 = vld [vmem:[%s0 + $0xf8] sm:$0xff]
  %v43 = vld [vmem:[%s0 + $0x100] sm:$0xff]
  %v44 = vld [vmem:[%s0 + $0x108] sm:$0xff]
  %v45 = vld [vmem:[%s0 + $0x110] sm:$0xff]
  %v46 = vld [vmem:[%s0 + $0x118] sm:$0xff]
  %v47 = vld [vmem:[%s0 + $0x120] sm:$0xff]
  %v48 = vld [vmem:[%s0 + $0x128] sm:$0xff]
  %v49 = vld [vmem:[%s0 + $0x130] sm:$0xff]
  %v50 = vld [vmem:[%s0 + $0x138] sm:$0xff]
  %v51 = vld [vmem:[%s0 + $0x140] sm:$0xff]
  %v52 = vld [vmem:[%s0 + $0x148] sm:$0xff]
  %v53 = vld [vmem:[%s0 + $0x150] sm:$0xff]
  %v54 = vld [vmem:[%s0 + $0x158] sm:$0xff]
  %v55 = vld [vmem:[%s0 + $0x160] sm:$0xff]
  %v56 = vld [vmem:[%s0 + $0x168] sm:$0xff]
  %v57 = vld [vmem:[%s0 + $0x170] sm:$0xff]
  %v58 = vld [vmem:[%s0 + $0x178] sm:$0xff]
  %v59 = vld [vmem:[%s0 + $0x180] sm:$0xff]
  %v60 = vld [vmem:[%s0 + $0x188] sm:$0xff]
  %v61 = vld [vmem:[%s0 + $0x190] sm:$0xff]
  %v62 = vld [vmem:[%s0 + $0x198] sm:$0xff]
  %v63 = vld [vmem:[%s0 + $0x1a0] sm:$0xff]
  %v64 = vld [vmem:[%s0 + $0x1a8] sm:$0xff]
  %v65 = vld [vmem:[%s0 + $0x1b0] sm:$0xff]
  %v66 = vld [vmem:[%s0 + $0x1b8] sm:$0xff]
  %v67 = vld [vmem:[%s0 + $0x1c0] sm:$0xff]
  %v68 = vld [vmem:[%s0 + $0x1c8] sm:$0xff]
  %v69 = vld [vmem:[%s0 + $0x1d0] sm:$0xff]
  %v70 = vld [vmem:[%s0 + $0x1d8] sm:$0xff]
  %v71 = vld [vmem:[%s0 + $0x1e0] sm:$0xf]
  %v72 = vld [vmem:[%s0 + $0x1e8] sm:$0xff]
  %v73 = vld [vmem:[%s0 + $0x1f0] sm:$0xff]
  %v74 = vld [vmem:[%s0 + $0x1f8] sm:$0xff]
  %v75 = vld [vmem:[%s0 + $0x200] sm:$0xff]
  %v76 = vld [vmem:[%s0 + $0x208] sm:$0xff]
  %v77 = vld [vmem:[%s0 + $0x210] sm:$0xff]
  %v78 = vld [vmem:[%s0 + $0x218] sm:$0xff]
  %v79 = vld [vmem:[%s0 + $0x220] sm:$0xff]
  %v80 = vld [vmem:[%s0 + $0x228] sm:$0xff]
  %v81 = vld [vmem:[%s0 + $0x230] sm:$0xff]
  %v82 = vld [vmem:[%s0 + $0x238] sm:$0xff]
  %v83 = vld [vmem:[%s0 + $0x240] sm:$0xff]
  %v84 = vld [vmem:[%s0 + $0x248] sm:$0xff]
  %v85 = vld [vmem:[%s0 + $0x250] sm:$0xff]
  %v86 = vld [vmem:[%s0 + $0x258] sm:$0xff]
  %v87 = vld [vmem:[%s0 + $0x260] sm:$0xff]
  %v88 = vld [vmem:[%s0 + $0x268] sm:$0xff]
  %v89 = vld [vmem:[%s0 + $0x270] sm:$0xff]
  %v90 = vld [vmem:[%s0 + $0x278] sm:$0xff]
  %v91 = vld [vmem:[%s0 + $0x280] sm:$0xff]
  %v92 = vld [vmem:[%s0 + $0x288] sm:$0xff]
  %v93 = vld [vmem:[%s0 + $0x290] sm:$0xff]
  %v94 = vld [vmem:[%s0 + $0x298] sm:$0xff]
  %v95 = vld [vmem:[%s0 + $0x2a0] sm:$0xff]
  %v96 = vld [vmem:[%s0 + $0x2a8] sm:$0xff]
  %v97 = vld [vmem:[%s0 + $0x2b0] sm:$0xff]
  %v98 = vld [vmem:[%s0 + $0x2b8] sm:$0xff]
  %v99 = vld [vmem:[%s0 + $0x2c0] sm:$0xff]
  %v100 = vld [vmem:[%s0 + $0x2c8] sm:$0xff]
  %v101 = vld [vmem:[%s0 + $0x2d0] sm:$0xff]
  %v102 = vld [vmem:[%s0 + $0x2d8] sm:$0xff]
  %v103 = vld [vmem:[%s0 + $0x2e0] sm:$0xff]
  %v104 = vld [vmem:[%s0 + $0x2e8] sm:$0xff]
  %v105 = vld [vmem:[%s0 + $0x2f0] sm:$0xff]
  %v106 = vld [vmem:[%s0 + $0x2f8] sm:$0xff]
  %v107 = vld [vmem:[%s0 + $0x300] sm:$0xff]
  %v108 = vld [vmem:[%s0 + $0x308] sm:$0xff]
  %v109 = vld [vmem:[%s0 + $0x310] sm:$0xff]
  %v110 = vld [vmem:[%s0 + $0x318] sm:$0xff]
  %v111 = vld [vmem:[%s0 + $0x320] sm:$0xff]
  %v112 = vld [vmem:[%s0 + $0x328] sm:$0xff]
  %v113 = vld [vmem:[%s0 + $0x330] sm:$0xff]
  %v114 = vld [vmem:[%s0 + $0x338] sm:$0xff]
  %v115 = vld [vmem:[%s0 + $0x340] sm:$0xff]
  %v116 = vld [vmem:[%s0 + $0x348] sm:$0xff]
  %v117 = vld [vmem:[%s0 + $0x350] sm:$0xff]
  %v118 = vld [vmem:[%s0 + $0x358] sm:$0xff]
  %v119 = vld [vmem:[%s0 + $0x360] sm:$0xff]
  %v120 = vld [vmem:[%s0 + $0x368] sm:$0xff]
  %v121 = vld [vmem:[%s0 + $0x370] sm:$0xff]
  %v122 = vld [vmem:[%s0 + $0x378] sm:$0xff]
  %v123 = vld [vmem:[%s0 + $0x380] sm:$0xff]
  %v124 = vld [vmem:[%s0 + $0x388] sm:$0xff]
  %v125 = vld [vmem:[%s0 + $0x390] sm:$0xff]
  %v126 = vld [vmem:[%s0 + $0x398] sm:$0xff]
  %v127 = vld [vmem:[%s0 + $0x3a0] sm:$0xff]
  %v128 = vld [vmem:[%s0 + $0x3a8] sm:$0xff]
  %v129 = vld [vmem:[%s0 + $0x3b0] sm:$0xff]
  %v130 = vld [vmem:[%s0 + $0x3b8] sm:$0xff]
  %v131 = vld [vmem:[%s0 + $0x3c0] sm:$0xff]
  %v132 = vld [vmem:[%s0 + $0x3c8] sm:$0xf]
  %v133 = vld [vmem:[%s0 + $0x3d0] sm:$0xff]
  %v134 = vld [vmem:[%s0 + $0x3d8] sm:$0xff]
  %v135 = vld [vmem:[%s0 + $0x3e0] sm:$0xff]
  %v136 = vld [vmem:[%s0 + $0x3e8] sm:$0xff]
  %v137 = vld [vmem:[%s0 + $0x3f0] sm:$0xff]
  %v138 = vld [vmem:[%s0 + $0x3f8] sm:$0xff]
  %v139 = vld [vmem:[%s0 + $0x400] sm:$0xff]
  %v140 = vld [vmem:[%s0 + $0x408] sm:$0xff]
  %v141 = vld [vmem:[%s0 + $0x410] sm:$0xff]
  %v142 = vld [vmem:[%s0 + $0x418] sm:$0xff]
  %v143 = vld [vmem:[%s0 + $0x420] sm:$0xff]
  %v144 = vld [vmem:[%s0 + $0x428] sm:$0xff]
  %v145 = vld [vmem:[%s0 + $0x430] sm:$0xff]
  %v146 = vld [vmem:[%s0 + $0x438] sm:$0xff]
  %v147 = vld [vmem:[%s0 + $0x440] sm:$0xff]
  %v148 = vld [vmem:[%s0 + $0x448] sm:$0xff]
  %v149 = vld [vmem:[%s0 + $0x450] sm:$0xff]
  %v150 = vld [vmem:[%s0 + $0x458] sm:$0xff]
  %v151 = vld [vmem:[%s0 + $0x460] sm:$0xff]
  %v152 = vld [vmem:[%s0 + $0x468] sm:$0xff]
  %v153 = vld [vmem:[%s0 + $0x470] sm:$0xff]
  %v154 = vld [vmem:[%s0 + $0x478] sm:$0xff]
  %v155 = vld [vmem:[%s0 + $0x480] sm:$0xff]
  %v156 = vld [vmem:[%s0 + $0x488] sm:$0xff]
  %v157 = vld [vmem:[%s0 + $0x490] sm:$0xff]
  %v158 = vld [vmem:[%s0 + $0x498] sm:$0xff]
  %v159 = vld [vmem:[%s0 + $0x4a0] sm:$0xff]
  %v160 = vld [vmem:[%s0 + $0x4a8] sm:$0xff]
  %v161 = vld [vmem:[%s0 + $0x4b0] sm:$0xff]
  %v162 = vld [vmem:[%s0 + $0x4b8] sm:$0xff]
  %v163 = vld [vmem:[%s0 + $0x4c0] sm:$0xff]
  %v164 = vld [vmem:[%s0 + $0x4c8] sm:$0xff]
  %v165 = vld [vmem:[%s0 + $0x4d0] sm:$0xff]
  %v166 = vld [vmem:[%s0 + $0x4d8] sm:$0xff]
  %v167 = vld [vmem:[%s0 + $0x4e0] sm:$0xff]
  %v168 = vld [vmem:[%s0 + $0x4e8] sm:$0xff]
  %v169 = vld [vmem:[%s0 + $0x4f0] sm:$0xff]
  %v170 = vld [vmem:[%s0 + $0x4f8] sm:$0xff]
  %v171 = vld [vmem:[%s0 + $0x500] sm:$0xff]
  %v172 = vld [vmem:[%s0 + $0x508] sm:$0xff]
  %v173 = vld [vmem:[%s0 + $0x510] sm:$0xff]
  %v174 = vld [vmem:[%s0 + $0x518] sm:$0xff]
  %v175 = vld [vmem:[%s0 + $0x520] sm:$0xff]
  %v176 = vld [vmem:[%s0 + $0x528] sm:$0xff]
  %v177 = vld [vmem:[%s0 + $0x530] sm:$0xff]
  %v178 = vld [vmem:[%s0 + $0x538] sm:$0xff]
  %v179 = vld [vmem:[%s0 + $0x540] sm:$0xff]
  %v180 = vld [vmem:[%s0 + $0x548] sm:$0xff]
  %v181 = vld [vmem:[%s0 + $0x550] sm:$0xff]
  %v182 = vld [vmem:[%s0 + $0x558] sm:$0xff]
  %v183 = vld [vmem:[%s0 + $0x560] sm:$0xff]
  %v184 = vld [vmem:[%s0 + $0x568] sm:$0xff]
  %v185 = vld [vmem:[%s0 + $0x570] sm:$0xff]
  %v186 = vld [vmem:[%s0 + $0x578] sm:$0xff]
  %v187 = vld [vmem:[%s0 + $0x580] sm:$0xff]
  %v188 = vld [vmem:[%s0 + $0x588] sm:$0xff]
  %v189 = vld [vmem:[%s0 + $0x590] sm:$0xff]
  %v190 = vld [vmem:[%s0 + $0x598] sm:$0xff]
  %v191 = vld [vmem:[%s0 + $0x5a0] sm:$0xff]
  %v192 = vld [vmem:[%s0 + $0x5a8] sm:$0xff]
  %v193 = vld [vmem:[%s0 + $0x5b0] sm:$0xf]
  %v194 = vld [vmem:[%s1] sm:$0xf]
  %v195 = vld [vmem:[%s1 + $0x4] sm:$0xf]
  %v196 = vld [vmem:[%s1 + $0x8] sm:$0xf]
  %198 = vset.pattern.permute.xlu0 0
  %199 = vperm.xlu0 %198, %v11
  %v200 = vpop.permute.xlu0 %199
  %203 = vset.pattern.permute.xlu0 0
  %204 = vperm.xlu0 %203, %v12
  %v205 = vpop.permute.xlu0 %204
  %208 = vset.pattern.permute.xlu0 0
  %209 = vperm.xlu0 %208, %v13
  %v210 = vpop.permute.xlu0 %209
  %213 = vset.pattern.permute.xlu0 0
  %214 = vperm.xlu0 %213, %v14
  %v215 = vpop.permute.xlu0 %214
  %218 = vset.pattern.permute.xlu0 0
  %219 = vperm.xlu0 %218, %v15
  %v220 = vpop.permute.xlu0 %219
  %223 = vset.pattern.permute.xlu0 0
  %224 = vperm.xlu0 %223, %v16
  %v225 = vpop.permute.xlu0 %224
  %228 = vset.pattern.permute.xlu0 0
  %229 = vperm.xlu0 %228, %v17
  %v230 = vpop.permute.xlu0 %229
  %233 = vset.pattern.permute.xlu0 0
  %234 = vperm.xlu0 %233, %v18
  %v235 = vpop.permute.xlu0 %234
  %238 = vset.pattern.permute.xlu0 0
  %239 = vperm.xlu0 %238, %v19
  %v240 = vpop.permute.xlu0 %239
  %243 = vset.pattern.permute.xlu0 0
  %244 = vperm.xlu0 %243, %v20
  %v245 = vpop.permute.xlu0 %244
  %248 = vset.pattern.permute.xlu0 0
  %249 = vperm.xlu0 %248, %v21
  %v250 = vpop.permute.xlu0 %249
  %253 = vset.pattern.permute.xlu0 0
  %254 = vperm.xlu0 %253, %v22
  %v255 = vpop.permute.xlu0 %254
  %258 = vset.pattern.permute.xlu0 0
  %259 = vperm.xlu0 %258, %v23
  %v260 = vpop.permute.xlu0 %259
  %263 = vset.pattern.permute.xlu0 0
  %264 = vperm.xlu0 %263, %v24
  %v265 = vpop.permute.xlu0 %264
  %268 = vset.pattern.permute.xlu0 0
  %269 = vperm.xlu0 %268, %v25
  %v270 = vpop.permute.xlu0 %269
  %273 = vset.pattern.permute.xlu0 0
  %274 = vperm.xlu0 %273, %v26
  %v275 = vpop.permute.xlu0 %274
  %278 = vset.pattern.permute.xlu0 0
  %279 = vperm.xlu0 %278, %v27
  %v280 = vpop.permute.xlu0 %279
  %283 = vset.pattern.permute.xlu0 0
  %284 = vperm.xlu0 %283, %v28
  %v285 = vpop.permute.xlu0 %284
  %288 = vset.pattern.permute.xlu0 0
  %289 = vperm.xlu0 %288, %v29
  %v290 = vpop.permute.xlu0 %289
  %293 = vset.pattern.permute.xlu0 0
  %294 = vperm.xlu0 %293, %v30
  %v295 = vpop.permute.xlu0 %294
  %298 = vset.pattern.permute.xlu0 0
  %299 = vperm.xlu0 %298, %v31
  %v300 = vpop.permute.xlu0 %299
  %303 = vset.pattern.permute.xlu0 0
  %304 = vperm.xlu0 %303, %v32
  %v305 = vpop.permute.xlu0 %304
  %308 = vset.pattern.permute.xlu0 0
  %309 = vperm.xlu0 %308, %v33
  %v310 = vpop.permute.xlu0 %309
  %313 = vset.pattern.permute.xlu0 0
  %314 = vperm.xlu0 %313, %v34
  %v315 = vpop.permute.xlu0 %314
  %318 = vset.pattern.permute.xlu0 0
  %319 = vperm.xlu0 %318, %v35
  %v320 = vpop.permute.xlu0 %319
  %323 = vset.pattern.permute.xlu0 0
  %324 = vperm.xlu0 %323, %v36
  %v325 = vpop.permute.xlu0 %324
  %328 = vset.pattern.permute.xlu0 0
  %329 = vperm.xlu0 %328, %v37
  %v330 = vpop.permute.xlu0 %329
  %333 = vset.pattern.permute.xlu0 0
  %334 = vperm.xlu0 %333, %v38
  %v335 = vpop.permute.xlu0 %334
  %338 = vset.pattern.permute.xlu0 0
  %339 = vperm.xlu0 %338, %v39
  %v340 = vpop.permute.xlu0 %339
  %343 = vset.pattern.permute.xlu0 0
  %344 = vperm.xlu0 %343, %v40
  %v345 = vpop.permute.xlu0 %344
  %348 = vset.pattern.permute.xlu0 0
  %349 = vperm.xlu0 %348, %v41
  %v350 = vpop.permute.xlu0 %349
  %353 = vset.pattern.permute.xlu0 0
  %354 = vperm.xlu0 %353, %v42
  %v355 = vpop.permute.xlu0 %354
  %358 = vset.pattern.permute.xlu0 0
  %359 = vperm.xlu0 %358, %v43
  %v360 = vpop.permute.xlu0 %359
  %363 = vset.pattern.permute.xlu0 0
  %364 = vperm.xlu0 %363, %v44
  %v365 = vpop.permute.xlu0 %364
  %368 = vset.pattern.permute.xlu0 0
  %369 = vperm.xlu0 %368, %v45
  %v370 = vpop.permute.xlu0 %369
  %373 = vset.pattern.permute.xlu0 0
  %374 = vperm.xlu0 %373, %v46
  %v375 = vpop.permute.xlu0 %374
  %378 = vset.pattern.permute.xlu0 0
  %379 = vperm.xlu0 %378, %v47
  %v380 = vpop.permute.xlu0 %379
  %383 = vset.pattern.permute.xlu0 0
  %384 = vperm.xlu0 %383, %v48
  %v385 = vpop.permute.xlu0 %384
  %388 = vset.pattern.permute.xlu0 0
  %389 = vperm.xlu0 %388, %v49
  %v390 = vpop.permute.xlu0 %389
  %393 = vset.pattern.permute.xlu0 0
  %394 = vperm.xlu0 %393, %v50
  %v395 = vpop.permute.xlu0 %394
  %398 = vset.pattern.permute.xlu0 0
  %399 = vperm.xlu0 %398, %v51
  %v400 = vpop.permute.xlu0 %399
  %403 = vset.pattern.permute.xlu0 0
  %404 = vperm.xlu0 %403, %v52
  %v405 = vpop.permute.xlu0 %404
  %408 = vset.pattern.permute.xlu0 0
  %409 = vperm.xlu0 %408, %v53
  %v410 = vpop.permute.xlu0 %409
  %413 = vset.pattern.permute.xlu0 0
  %414 = vperm.xlu0 %413, %v54
  %v415 = vpop.permute.xlu0 %414
  %418 = vset.pattern.permute.xlu0 0
  %419 = vperm.xlu0 %418, %v55
  %v420 = vpop.permute.xlu0 %419
  %423 = vset.pattern.permute.xlu0 0
  %424 = vperm.xlu0 %423, %v56
  %v425 = vpop.permute.xlu0 %424
  %428 = vset.pattern.permute.xlu0 0
  %429 = vperm.xlu0 %428, %v57
  %v430 = vpop.permute.xlu0 %429
  %433 = vset.pattern.permute.xlu0 0
  %434 = vperm.xlu0 %433, %v58
  %v435 = vpop.permute.xlu0 %434
  %438 = vset.pattern.permute.xlu0 0
  %439 = vperm.xlu0 %438, %v59
  %v440 = vpop.permute.xlu0 %439
  %443 = vset.pattern.permute.xlu0 0
  %444 = vperm.xlu0 %443, %v60
  %v445 = vpop.permute.xlu0 %444
  %448 = vset.pattern.permute.xlu0 0
  %449 = vperm.xlu0 %448, %v61
  %v450 = vpop.permute.xlu0 %449
  %453 = vset.pattern.permute.xlu0 0
  %454 = vperm.xlu0 %453, %v62
  %v455 = vpop.permute.xlu0 %454
  %458 = vset.pattern.permute.xlu0 0
  %459 = vperm.xlu0 %458, %v63
  %v460 = vpop.permute.xlu0 %459
  %463 = vset.pattern.permute.xlu0 0
  %464 = vperm.xlu0 %463, %v64
  %v465 = vpop.permute.xlu0 %464
  %468 = vset.pattern.permute.xlu0 0
  %469 = vperm.xlu0 %468, %v65
  %v470 = vpop.permute.xlu0 %469
  %473 = vset.pattern.permute.xlu0 0
  %474 = vperm.xlu0 %473, %v66
  %v475 = vpop.permute.xlu0 %474
  %478 = vset.pattern.permute.xlu0 0
  %479 = vperm.xlu0 %478, %v67
  %v480 = vpop.permute.xlu0 %479
  %483 = vset.pattern.permute.xlu0 0
  %484 = vperm.xlu0 %483, %v68
  %v485 = vpop.permute.xlu0 %484
  %488 = vset.pattern.permute.xlu0 0
  %489 = vperm.xlu0 %488, %v69
  %v490 = vpop.permute.xlu0 %489
  %493 = vset.pattern.permute.xlu0 0
  %494 = vperm.xlu0 %493, %v70
  %v495 = vpop.permute.xlu0 %494
  %498 = vset.pattern.permute.xlu0 0
  %499 = vperm.xlu0 %498, %v71
  %v500 = vpop.permute.xlu0 %499
  %503 = vset.pattern.permute.xlu0 0
  %504 = vperm.xlu0 %503, %v72
  %v505 = vpop.permute.xlu0 %504
  %508 = vset.pattern.permute.xlu0 0
  %509 = vperm.xlu0 %508, %v73
  %v510 = vpop.permute.xlu0 %509
  %513 = vset.pattern.permute.xlu0 0
  %514 = vperm.xlu0 %513, %v74
  %v515 = vpop.permute.xlu0 %514
  %518 = vset.pattern.permute.xlu0 0
  %519 = vperm.xlu0 %518, %v75
  %v520 = vpop.permute.xlu0 %519
  %523 = vset.pattern.permute.xlu0 0
  %524 = vperm.xlu0 %523, %v76
  %v525 = vpop.permute.xlu0 %524
  %528 = vset.pattern.permute.xlu0 0
  %529 = vperm.xlu0 %528, %v77
  %v530 = vpop.permute.xlu0 %529
  %533 = vset.pattern.permute.xlu0 0
  %534 = vperm.xlu0 %533, %v78
  %v535 = vpop.permute.xlu0 %534
  %538 = vset.pattern.permute.xlu0 0
  %539 = vperm.xlu0 %538, %v79
  %v540 = vpop.permute.xlu0 %539
  %543 = vset.pattern.permute.xlu0 0
  %544 = vperm.xlu0 %543, %v80
  %v545 = vpop.permute.xlu0 %544
  %548 = vset.pattern.permute.xlu0 0
  %549 = vperm.xlu0 %548, %v81
  %v550 = vpop.permute.xlu0 %549
  %553 = vset.pattern.permute.xlu0 0
  %554 = vperm.xlu0 %553, %v82
  %v555 = vpop.permute.xlu0 %554
  %558 = vset.pattern.permute.xlu0 0
  %559 = vperm.xlu0 %558, %v83
  %v560 = vpop.permute.xlu0 %559
  %563 = vset.pattern.permute.xlu0 0
  %564 = vperm.xlu0 %563, %v84
  %v565 = vpop.permute.xlu0 %564
  %568 = vset.pattern.permute.xlu0 0
  %569 = vperm.xlu0 %568, %v85
  %v570 = vpop.permute.xlu0 %569
  %573 = vset.pattern.permute.xlu0 0
  %574 = vperm.xlu0 %573, %v86
  %v575 = vpop.permute.xlu0 %574
  %578 = vset.pattern.permute.xlu0 0
  %579 = vperm.xlu0 %578, %v87
  %v580 = vpop.permute.xlu0 %579
  %583 = vset.pattern.permute.xlu0 0
  %584 = vperm.xlu0 %583, %v88
  %v585 = vpop.permute.xlu0 %584
  %588 = vset.pattern.permute.xlu0 0
  %589 = vperm.xlu0 %588, %v89
  %v590 = vpop.permute.xlu0 %589
  %593 = vset.pattern.permute.xlu0 0
  %594 = vperm.xlu0 %593, %v90
  %v595 = vpop.permute.xlu0 %594
  %598 = vset.pattern.permute.xlu0 0
  %599 = vperm.xlu0 %598, %v91
  %v600 = vpop.permute.xlu0 %599
  %603 = vset.pattern.permute.xlu0 0
  %604 = vperm.xlu0 %603, %v92
  %v605 = vpop.permute.xlu0 %604
  %608 = vset.pattern.permute.xlu0 0
  %609 = vperm.xlu0 %608, %v93
  %v610 = vpop.permute.xlu0 %609
  %613 = vset.pattern.permute.xlu0 0
  %614 = vperm.xlu0 %613, %v94
  %v615 = vpop.permute.xlu0 %614
  %618 = vset.pattern.permute.xlu0 0
  %619 = vperm.xlu0 %618, %v95
  %v620 = vpop.permute.xlu0 %619
  %623 = vset.pattern.permute.xlu0 0
  %624 = vperm.xlu0 %623, %v96
  %v625 = vpop.permute.xlu0 %624
  %628 = vset.pattern.permute.xlu0 0
  %629 = vperm.xlu0 %628, %v97
  %v630 = vpop.permute.xlu0 %629
  %633 = vset.pattern.permute.xlu0 0
  %634 = vperm.xlu0 %633, %v98
  %v635 = vpop.permute.xlu0 %634
  %638 = vset.pattern.permute.xlu0 0
  %639 = vperm.xlu0 %638, %v99
  %v640 = vpop.permute.xlu0 %639
  %643 = vset.pattern.permute.xlu0 0
  %644 = vperm.xlu0 %643, %v100
  %v645 = vpop.permute.xlu0 %644
  %648 = vset.pattern.permute.xlu0 0
  %649 = vperm.xlu0 %648, %v101
  %v650 = vpop.permute.xlu0 %649
  %653 = vset.pattern.permute.xlu0 0
  %654 = vperm.xlu0 %653, %v102
  %v655 = vpop.permute.xlu0 %654
  %658 = vset.pattern.permute.xlu0 0
  %659 = vperm.xlu0 %658, %v103
  %v660 = vpop.permute.xlu0 %659
  %663 = vset.pattern.permute.xlu0 0
  %664 = vperm.xlu0 %663, %v104
  %v665 = vpop.permute.xlu0 %664
  %668 = vset.pattern.permute.xlu0 0
  %669 = vperm.xlu0 %668, %v105
  %v670 = vpop.permute.xlu0 %669
  %673 = vset.pattern.permute.xlu0 0
  %674 = vperm.xlu0 %673, %v106
  %v675 = vpop.permute.xlu0 %674
  %678 = vset.pattern.permute.xlu0 0
  %679 = vperm.xlu0 %678, %v107
  %v680 = vpop.permute.xlu0 %679
  %683 = vset.pattern.permute.xlu0 0
  %684 = vperm.xlu0 %683, %v108
  %v685 = vpop.permute.xlu0 %684
  %688 = vset.pattern.permute.xlu0 0
  %689 = vperm.xlu0 %688, %v109
  %v690 = vpop.permute.xlu0 %689
  %693 = vset.pattern.permute.xlu0 0
  %694 = vperm.xlu0 %693, %v110
  %v695 = vpop.permute.xlu0 %694
  %698 = vset.pattern.permute.xlu0 0
  %699 = vperm.xlu0 %698, %v111
  %v700 = vpop.permute.xlu0 %699
  %703 = vset.pattern.permute.xlu0 0
  %704 = vperm.xlu0 %703, %v112
  %v705 = vpop.permute.xlu0 %704
  %708 = vset.pattern.permute.xlu0 0
  %709 = vperm.xlu0 %708, %v113
  %v710 = vpop.permute.xlu0 %709
  %713 = vset.pattern.permute.xlu0 0
  %714 = vperm.xlu0 %713, %v114
  %v715 = vpop.permute.xlu0 %714
  %718 = vset.pattern.permute.xlu0 0
  %719 = vperm.xlu0 %718, %v115
  %v720 = vpop.permute.xlu0 %719
  %723 = vset.pattern.permute.xlu0 0
  %724 = vperm.xlu0 %723, %v116
  %v725 = vpop.permute.xlu0 %724
  %728 = vset.pattern.permute.xlu0 0
  %729 = vperm.xlu0 %728, %v117
  %v730 = vpop.permute.xlu0 %729
  %733 = vset.pattern.permute.xlu0 0
  %734 = vperm.xlu0 %733, %v118
  %v735 = vpop.permute.xlu0 %734
  %738 = vset.pattern.permute.xlu0 0
  %739 = vperm.xlu0 %738, %v119
  %v740 = vpop.permute.xlu0 %739
  %743 = vset.pattern.permute.xlu0 0
  %744 = vperm.xlu0 %743, %v120
  %v745 = vpop.permute.xlu0 %744
  %748 = vset.pattern.permute.xlu0 0
  %749 = vperm.xlu0 %748, %v121
  %v750 = vpop.permute.xlu0 %749
  %753 = vset.pattern.permute.xlu0 0
  %754 = vperm.xlu0 %753, %v122
  %v755 = vpop.permute.xlu0 %754
  %758 = vset.pattern.permute.xlu0 0
  %759 = vperm.xlu0 %758, %v123
  %v760 = vpop.permute.xlu0 %759
  %763 = vset.pattern.permute.xlu0 0
  %764 = vperm.xlu0 %763, %v124
  %v765 = vpop.permute.xlu0 %764
  %768 = vset.pattern.permute.xlu0 0
  %769 = vperm.xlu0 %768, %v125
  %v770 = vpop.permute.xlu0 %769
  %773 = vset.pattern.permute.xlu0 0
  %774 = vperm.xlu0 %773, %v126
  %v775 = vpop.permute.xlu0 %774
  %778 = vset.pattern.permute.xlu0 0
  %779 = vperm.xlu0 %778, %v127
  %v780 = vpop.permute.xlu0 %779
  %783 = vset.pattern.permute.xlu0 0
  %784 = vperm.xlu0 %783, %v128
  %v785 = vpop.permute.xlu0 %784
  %788 = vset.pattern.permute.xlu0 0
  %789 = vperm.xlu0 %788, %v129
  %v790 = vpop.permute.xlu0 %789
  %793 = vset.pattern.permute.xlu0 0
  %794 = vperm.xlu0 %793, %v130
  %v795 = vpop.permute.xlu0 %794
  %798 = vset.pattern.permute.xlu0 0
  %799 = vperm.xlu0 %798, %v131
  %v800 = vpop.permute.xlu0 %799
  %803 = vset.pattern.permute.xlu0 0
  %804 = vperm.xlu0 %803, %v132
  %v805 = vpop.permute.xlu0 %804
  %808 = vset.pattern.permute.xlu0 0
  %809 = vperm.xlu0 %808, %v133
  %v810 = vpop.permute.xlu0 %809
  %813 = vset.pattern.permute.xlu0 0
  %814 = vperm.xlu0 %813, %v134
  %v815 = vpop.permute.xlu0 %814
  %818 = vset.pattern.permute.xlu0 0
  %819 = vperm.xlu0 %818, %v135
  %v820 = vpop.permute.xlu0 %819
  %823 = vset.pattern.permute.xlu0 0
  %824 = vperm.xlu0 %823, %v136
  %v825 = vpop.permute.xlu0 %824
  %828 = vset.pattern.permute.xlu0 0
  %829 = vperm.xlu0 %828, %v137
  %v830 = vpop.permute.xlu0 %829
  %833 = vset.pattern.permute.xlu0 0
  %834 = vperm.xlu0 %833, %v138
  %v835 = vpop.permute.xlu0 %834
  %838 = vset.pattern.permute.xlu0 0
  %839 = vperm.xlu0 %838, %v139
  %v840 = vpop.permute.xlu0 %839
  %843 = vset.pattern.permute.xlu0 0
  %844 = vperm.xlu0 %843, %v140
  %v845 = vpop.permute.xlu0 %844
  %848 = vset.pattern.permute.xlu0 0
  %849 = vperm.xlu0 %848, %v141
  %v850 = vpop.permute.xlu0 %849
  %853 = vset.pattern.permute.xlu0 0
  %854 = vperm.xlu0 %853, %v142
  %v855 = vpop.permute.xlu0 %854
  %858 = vset.pattern.permute.xlu0 0
  %859 = vperm.xlu0 %858, %v143
  %v860 = vpop.permute.xlu0 %859
  %863 = vset.pattern.permute.xlu0 0
  %864 = vperm.xlu0 %863, %v144
  %v865 = vpop.permute.xlu0 %864
  %868 = vset.pattern.permute.xlu0 0
  %869 = vperm.xlu0 %868, %v145
  %v870 = vpop.permute.xlu0 %869
  %873 = vset.pattern.permute.xlu0 0
  %874 = vperm.xlu0 %873, %v146
  %v875 = vpop.permute.xlu0 %874
  %878 = vset.pattern.permute.xlu0 0
  %879 = vperm.xlu0 %878, %v147
  %v880 = vpop.permute.xlu0 %879
  %883 = vset.pattern.permute.xlu0 0
  %884 = vperm.xlu0 %883, %v148
  %v885 = vpop.permute.xlu0 %884
  %888 = vset.pattern.permute.xlu0 0
  %889 = vperm.xlu0 %888, %v149
  %v890 = vpop.permute.xlu0 %889
  %893 = vset.pattern.permute.xlu0 0
  %894 = vperm.xlu0 %893, %v150
  %v895 = vpop.permute.xlu0 %894
  %898 = vset.pattern.permute.xlu0 0
  %899 = vperm.xlu0 %898, %v151
  %v900 = vpop.permute.xlu0 %899
  %903 = vset.pattern.permute.xlu0 0
  %904 = vperm.xlu0 %903, %v152
  %v905 = vpop.permute.xlu0 %904
  %908 = vset.pattern.permute.xlu0 0
  %909 = vperm.xlu0 %908, %v153
  %v910 = vpop.permute.xlu0 %909
  %913 = vset.pattern.permute.xlu0 0
  %914 = vperm.xlu0 %913, %v154
  %v915 = vpop.permute.xlu0 %914
  %918 = vset.pattern.permute.xlu0 0
  %919 = vperm.xlu0 %918, %v155
  %v920 = vpop.permute.xlu0 %919
  %923 = vset.pattern.permute.xlu0 0
  %924 = vperm.xlu0 %923, %v156
  %v925 = vpop.permute.xlu0 %924
  %928 = vset.pattern.permute.xlu0 0
  %929 = vperm.xlu0 %928, %v157
  %v930 = vpop.permute.xlu0 %929
  %933 = vset.pattern.permute.xlu0 0
  %934 = vperm.xlu0 %933, %v158
  %v935 = vpop.permute.xlu0 %934
  %938 = vset.pattern.permute.xlu0 0
  %939 = vperm.xlu0 %938, %v159
  %v940 = vpop.permute.xlu0 %939
  %943 = vset.pattern.permute.xlu0 0
  %944 = vperm.xlu0 %943, %v160
  %v945 = vpop.permute.xlu0 %944
  %948 = vset.pattern.permute.xlu0 0
  %949 = vperm.xlu0 %948, %v161
  %v950 = vpop.permute.xlu0 %949
  %953 = vset.pattern.permute.xlu0 0
  %954 = vperm.xlu0 %953, %v162
  %v955 = vpop.permute.xlu0 %954
  %958 = vset.pattern.permute.xlu0 0
  %959 = vperm.xlu0 %958, %v163
  %v960 = vpop.permute.xlu0 %959
  %963 = vset.pattern.permute.xlu0 0
  %964 = vperm.xlu0 %963, %v164
  %v965 = vpop.permute.xlu0 %964
  %968 = vset.pattern.permute.xlu0 0
  %969 = vperm.xlu0 %968, %v165
  %v970 = vpop.permute.xlu0 %969
  %973 = vset.pattern.permute.xlu0 0
  %974 = vperm.xlu0 %973, %v166
  %v975 = vpop.permute.xlu0 %974
  %978 = vset.pattern.permute.xlu0 0
  %979 = vperm.xlu0 %978, %v167
  %v980 = vpop.permute.xlu0 %979
  %983 = vset.pattern.permute.xlu0 0
  %984 = vperm.xlu0 %983, %v168
  %v985 = vpop.permute.xlu0 %984
  %988 = vset.pattern.permute.xlu0 0
  %989 = vperm.xlu0 %988, %v169
  %v990 = vpop.permute.xlu0 %989
  %993 = vset.pattern.permute.xlu0 0
  %994 = vperm.xlu0 %993, %v170
  %v995 = vpop.permute.xlu0 %994
  %998 = vset.pattern.permute.xlu0 0
  %999 = vperm.xlu0 %998, %v171
  %v1000 = vpop.permute.xlu0 %999
  %1003 = vset.pattern.permute.xlu0 0
  %1004 = vperm.xlu0 %1003, %v172
  %v1005 = vpop.permute.xlu0 %1004
  %1008 = vset.pattern.permute.xlu0 0
  %1009 = vperm.xlu0 %1008, %v173
  %v1010 = vpop.permute.xlu0 %1009
  %1013 = vset.pattern.permute.xlu0 0
  %1014 = vperm.xlu0 %1013, %v174
  %v1015 = vpop.permute.xlu0 %1014
  %1018 = vset.pattern.permute.xlu0 0
  %1019 = vperm.xlu0 %1018, %v175
  %v1020 = vpop.permute.xlu0 %1019
  %1023 = vset.pattern.permute.xlu0 0
  %1024 = vperm.xlu0 %1023, %v176
  %v1025 = vpop.permute.xlu0 %1024
  %1028 = vset.pattern.permute.xlu0 0
  %1029 = vperm.xlu0 %1028, %v177
  %v1030 = vpop.permute.xlu0 %1029
  %1033 = vset.pattern.permute.xlu0 0
  %1034 = vperm.xlu0 %1033, %v178
  %v1035 = vpop.permute.xlu0 %1034
  %1038 = vset.pattern.permute.xlu0 0
  %1039 = vperm.xlu0 %1038, %v179
  %v1040 = vpop.permute.xlu0 %1039
  %1043 = vset.pattern.permute.xlu0 0
  %1044 = vperm.xlu0 %1043, %v180
  %v1045 = vpop.permute.xlu0 %1044
  %1048 = vset.pattern.permute.xlu0 0
  %1049 = vperm.xlu0 %1048, %v181
  %v1050 = vpop.permute.xlu0 %1049
  %1053 = vset.pattern.permute.xlu0 0
  %1054 = vperm.xlu0 %1053, %v182
  %v1055 = vpop.permute.xlu0 %1054
  %1058 = vset.pattern.permute.xlu0 0
  %1059 = vperm.xlu0 %1058, %v183
  %v1060 = vpop.permute.xlu0 %1059
  %1063 = vset.pattern.permute.xlu0 0
  %1064 = vperm.xlu0 %1063, %v184
  %v1065 = vpop.permute.xlu0 %1064
  %1068 = vset.pattern.permute.xlu0 0
  %1069 = vperm.xlu0 %1068, %v185
  %v1070 = vpop.permute.xlu0 %1069
  %1073 = vset.pattern.permute.xlu0 0
  %1074 = vperm.xlu0 %1073, %v186
  %v1075 = vpop.permute.xlu0 %1074
  %1078 = vset.pattern.permute.xlu0 0
  %1079 = vperm.xlu0 %1078, %v187
  %v1080 = vpop.permute.xlu0 %1079
  %1083 = vset.pattern.permute.xlu0 0
  %1084 = vperm.xlu0 %1083, %v188
  %v1085 = vpop.permute.xlu0 %1084
  %1088 = vset.pattern.permute.xlu0 0
  %1089 = vperm.xlu0 %1088, %v189
  %v1090 = vpop.permute.xlu0 %1089
  %1093 = vset.pattern.permute.xlu0 0
  %1094 = vperm.xlu0 %1093, %v190
  %v1095 = vpop.permute.xlu0 %1094
  %1098 = vset.pattern.permute.xlu0 0
  %1099 = vperm.xlu0 %1098, %v191
  %v1100 = vpop.permute.xlu0 %1099
  %1103 = vset.pattern.permute.xlu0 0
  %1104 = vperm.xlu0 %1103, %v192
  %v1105 = vpop.permute.xlu0 %1104
  %1108 = vset.pattern.permute.xlu0 0
  %1109 = vperm.xlu0 %1108, %v193
  %v1110 = vpop.permute.xlu0 %1109
  %v1115 = vlaneseq
  %v1116 = vshrl.u32 %v1115, 7
  %v1117 = vsub.s32 0, %v1116
  %v1118 = vrot.slane %v194, %v1117
  %v1119 = vlaneseq
  %v1120 = vshrl.u32 %v1119, 7
  %v1121 = vsub.s32 2, %v1120
  %v1122 = vrot.slane %v194, %v1121
  %v1123 = vlaneseq
  %v1124 = vshrl.u32 %v1123, 7
  %v1125 = vsub.s32 0, %v1124
  %v1126 = vrot.slane %v195, %v1125
  %v1127 = vlaneseq
  %v1128 = vshrl.u32 %v1127, 7
  %v1129 = vsub.s32 2, %v1128
  %v1130 = vrot.slane %v195, %v1129
  %v1131 = vlaneseq
  %v1132 = vshrl.u32 %v1131, 7
  %v1133 = vsub.s32 0, %v1132
  %v1134 = vrot.slane %v196, %v1133
  %v1135 = vlaneseq
  %v1136 = vshrl.u32 %v1135, 7
  %v1137 = vsub.s32 2, %v1136
  %v1138 = vrot.slane %v196, %v1137
  %v1145 = vlaneseq
  %v1146 = vshrl.u32 %v1145, 7
  %v1147 = vsub.s32 0, %v1146
  %v1148 = vrot.slane %v1118, %v1147
  %v1149 = vlaneseq
  %v1150 = vshrl.u32 %v1149, 7
  %v1151 = vsub.s32 0, %v1150
  %v1152 = vrot.slane %v1122, %v1151
  %v1153 = vlaneseq
  %v1154 = vshrl.u32 %v1153, 7
  %v1155 = vsub.s32 0, %v1154
  %v1156 = vrot.slane %v1126, %v1155
  %v1157 = vlaneseq
  %v1158 = vshrl.u32 %v1157, 7
  %v1159 = vsub.s32 0, %v1158
  %v1160 = vrot.slane %v1130, %v1159
  %v1161 = vlaneseq
  %v1162 = vshrl.u32 %v1161, 7
  %v1163 = vsub.s32 0, %v1162
  %v1164 = vrot.slane %v1134, %v1163
  %v1165 = vlaneseq
  %v1166 = vshrl.u32 %v1165, 7
  %v1167 = vsub.s32 0, %v1166
  %v1168 = vrot.slane %v1138, %v1167
  %v1169 = vmul.f32 %v200, %v1148
  %v1170 = vmul.f32 %v200, %v1152
  %v1171 = vmul.f32 %v205, %v1148
  %v1172 = vmul.f32 %v205, %v1152
  %v1173 = vmul.f32 %v210, %v1148
  %v1174 = vmul.f32 %v210, %v1152
  %v1175 = vmul.f32 %v215, %v1148
  %v1176 = vmul.f32 %v215, %v1152
  %v1177 = vmul.f32 %v220, %v1148
  %v1178 = vmul.f32 %v220, %v1152
  %v1179 = vmul.f32 %v225, %v1148
  %v1180 = vmul.f32 %v225, %v1152
  %v1181 = vmul.f32 %v230, %v1148
  %v1182 = vmul.f32 %v230, %v1152
  %v1183 = vmul.f32 %v235, %v1148
  %v1184 = vmul.f32 %v235, %v1152
  %v1185 = vmul.f32 %v240, %v1148
  %v1186 = vmul.f32 %v240, %v1152
  %v1187 = vmul.f32 %v245, %v1148
  %v1188 = vmul.f32 %v245, %v1152
  %v1189 = vmul.f32 %v250, %v1148
  %v1190 = vmul.f32 %v250, %v1152
  %v1191 = vmul.f32 %v255, %v1148
  %v1192 = vmul.f32 %v255, %v1152
  %v1193 = vmul.f32 %v260, %v1148
  %v1194 = vmul.f32 %v260, %v1152
  %v1195 = vmul.f32 %v265, %v1148
  %v1196 = vmul.f32 %v265, %v1152
  %v1197 = vmul.f32 %v270, %v1148
  %v1198 = vmul.f32 %v270, %v1152
  %v1199 = vmul.f32 %v275, %v1148
  %v1200 = vmul.f32 %v275, %v1152
  %v1201 = vmul.f32 %v280, %v1148
  %v1202 = vmul.f32 %v280, %v1152
  %v1203 = vmul.f32 %v285, %v1148
  %v1204 = vmul.f32 %v285, %v1152
  %v1205 = vmul.f32 %v290, %v1148
  %v1206 = vmul.f32 %v290, %v1152
  %v1207 = vmul.f32 %v295, %v1148
  %v1208 = vmul.f32 %v295, %v1152
  %v1209 = vmul.f32 %v300, %v1148
  %v1210 = vmul.f32 %v300, %v1152
  %v1211 = vmul.f32 %v305, %v1148
  %v1212 = vmul.f32 %v305, %v1152
  %v1213 = vmul.f32 %v310, %v1148
  %v1214 = vmul.f32 %v310, %v1152
  %v1215 = vmul.f32 %v315, %v1148
  %v1216 = vmul.f32 %v315, %v1152
  %v1217 = vmul.f32 %v320, %v1148
  %v1218 = vmul.f32 %v320, %v1152
  %v1219 = vmul.f32 %v325, %v1148
  %v1220 = vmul.f32 %v325, %v1152
  %v1221 = vmul.f32 %v330, %v1148
  %v1222 = vmul.f32 %v330, %v1152
  %v1223 = vmul.f32 %v335, %v1148
  %v1224 = vmul.f32 %v335, %v1152
  %v1225 = vmul.f32 %v340, %v1148
  %v1226 = vmul.f32 %v340, %v1152
  %v1227 = vmul.f32 %v345, %v1148
  %v1228 = vmul.f32 %v345, %v1152
  %v1229 = vmul.f32 %v350, %v1148
  %v1230 = vmul.f32 %v350, %v1152
  %v1231 = vmul.f32 %v355, %v1148
  %v1232 = vmul.f32 %v355, %v1152
  %v1233 = vmul.f32 %v360, %v1148
  %v1234 = vmul.f32 %v360, %v1152
  %v1235 = vmul.f32 %v365, %v1148
  %v1236 = vmul.f32 %v365, %v1152
  %v1237 = vmul.f32 %v370, %v1148
  %v1238 = vmul.f32 %v370, %v1152
  %v1239 = vmul.f32 %v375, %v1148
  %v1240 = vmul.f32 %v375, %v1152
  %v1241 = vmul.f32 %v380, %v1148
  %v1242 = vmul.f32 %v380, %v1152
  %v1243 = vmul.f32 %v385, %v1148
  %v1244 = vmul.f32 %v385, %v1152
  %v1245 = vmul.f32 %v390, %v1148
  %v1246 = vmul.f32 %v390, %v1152
  %v1247 = vmul.f32 %v395, %v1148
  %v1248 = vmul.f32 %v395, %v1152
  %v1249 = vmul.f32 %v400, %v1148
  %v1250 = vmul.f32 %v400, %v1152
  %v1251 = vmul.f32 %v405, %v1148
  %v1252 = vmul.f32 %v405, %v1152
  %v1253 = vmul.f32 %v410, %v1148
  %v1254 = vmul.f32 %v410, %v1152
  %v1255 = vmul.f32 %v415, %v1148
  %v1256 = vmul.f32 %v415, %v1152
  %v1257 = vmul.f32 %v420, %v1148
  %v1258 = vmul.f32 %v420, %v1152
  %v1259 = vmul.f32 %v425, %v1148
  %v1260 = vmul.f32 %v425, %v1152
  %v1261 = vmul.f32 %v430, %v1148
  %v1262 = vmul.f32 %v430, %v1152
  %v1263 = vmul.f32 %v435, %v1148
  %v1264 = vmul.f32 %v435, %v1152
  %v1265 = vmul.f32 %v440, %v1148
  %v1266 = vmul.f32 %v440, %v1152
  %v1267 = vmul.f32 %v445, %v1148
  %v1268 = vmul.f32 %v445, %v1152
  %v1269 = vmul.f32 %v450, %v1148
  %v1270 = vmul.f32 %v450, %v1152
  %v1271 = vmul.f32 %v455, %v1148
  %v1272 = vmul.f32 %v455, %v1152
  %v1273 = vmul.f32 %v460, %v1148
  %v1274 = vmul.f32 %v460, %v1152
  %v1275 = vmul.f32 %v465, %v1148
  %v1276 = vmul.f32 %v465, %v1152
  %v1277 = vmul.f32 %v470, %v1148
  %v1278 = vmul.f32 %v470, %v1152
  %v1279 = vmul.f32 %v475, %v1148
  %v1280 = vmul.f32 %v475, %v1152
  %v1281 = vmul.f32 %v480, %v1148
  %v1282 = vmul.f32 %v480, %v1152
  %v1283 = vmul.f32 %v485, %v1148
  %v1284 = vmul.f32 %v485, %v1152
  %v1285 = vmul.f32 %v490, %v1148
  %v1286 = vmul.f32 %v490, %v1152
  %v1287 = vmul.f32 %v495, %v1148
  %v1288 = vmul.f32 %v495, %v1152
  %v1289 = vmul.f32 %v500, %v1148
  %v1290 = vmul.f32 %v500, %v1152
  %v1291 = vmul.f32 %v505, %v1156
  %v1292 = vmul.f32 %v505, %v1160
  %v1293 = vmul.f32 %v510, %v1156
  %v1294 = vmul.f32 %v510, %v1160
  %v1295 = vmul.f32 %v515, %v1156
  %v1296 = vmul.f32 %v515, %v1160
  %v1297 = vmul.f32 %v520, %v1156
  %v1298 = vmul.f32 %v520, %v1160
  %v1299 = vmul.f32 %v525, %v1156
  %v1300 = vmul.f32 %v525, %v1160
  %v1301 = vmul.f32 %v530, %v1156
  %v1302 = vmul.f32 %v530, %v1160
  %v1303 = vmul.f32 %v535, %v1156
  %v1304 = vmul.f32 %v535, %v1160
  %v1305 = vmul.f32 %v540, %v1156
  %v1306 = vmul.f32 %v540, %v1160
  %v1307 = vmul.f32 %v545, %v1156
  %v1308 = vmul.f32 %v545, %v1160
  %v1309 = vmul.f32 %v550, %v1156
  %v1310 = vmul.f32 %v550, %v1160
  %v1311 = vmul.f32 %v555, %v1156
  %v1312 = vmul.f32 %v555, %v1160
  %v1313 = vmul.f32 %v560, %v1156
  %v1314 = vmul.f32 %v560, %v1160
  %v1315 = vmul.f32 %v565, %v1156
  %v1316 = vmul.f32 %v565, %v1160
  %v1317 = vmul.f32 %v570, %v1156
  %v1318 = vmul.f32 %v570, %v1160
  %v1319 = vmul.f32 %v575, %v1156
  %v1320 = vmul.f32 %v575, %v1160
  %v1321 = vmul.f32 %v580, %v1156
  %v1322 = vmul.f32 %v580, %v1160
  %v1323 = vmul.f32 %v585, %v1156
  %v1324 = vmul.f32 %v585, %v1160
  %v1325 = vmul.f32 %v590, %v1156
  %v1326 = vmul.f32 %v590, %v1160
  %v1327 = vmul.f32 %v595, %v1156
  %v1328 = vmul.f32 %v595, %v1160
  %v1329 = vmul.f32 %v600, %v1156
  %v1330 = vmul.f32 %v600, %v1160
  %v1331 = vmul.f32 %v605, %v1156
  %v1332 = vmul.f32 %v605, %v1160
  %v1333 = vmul.f32 %v610, %v1156
  %v1334 = vmul.f32 %v610, %v1160
  %v1335 = vmul.f32 %v615, %v1156
  %v1336 = vmul.f32 %v615, %v1160
  %v1337 = vmul.f32 %v620, %v1156
  %v1338 = vmul.f32 %v620, %v1160
  %v1339 = vmul.f32 %v625, %v1156
  %v1340 = vmul.f32 %v625, %v1160
  %v1341 = vmul.f32 %v630, %v1156
  %v1342 = vmul.f32 %v630, %v1160
  %v1343 = vmul.f32 %v635, %v1156
  %v1344 = vmul.f32 %v635, %v1160
  %v1345 = vmul.f32 %v640, %v1156
  %v1346 = vmul.f32 %v640, %v1160
  %v1347 = vmul.f32 %v645, %v1156
  %v1348 = vmul.f32 %v645, %v1160
  %v1349 = vmul.f32 %v650, %v1156
  %v1350 = vmul.f32 %v650, %v1160
  %v1351 = vmul.f32 %v655, %v1156
  %v1352 = vmul.f32 %v655, %v1160
  %v1353 = vmul.f32 %v660, %v1156
  %v1354 = vmul.f32 %v660, %v1160
  %v1355 = vmul.f32 %v665, %v1156
  %v1356 = vmul.f32 %v665, %v1160
  %v1357 = vmul.f32 %v670, %v1156
  %v1358 = vmul.f32 %v670, %v1160
  %v1359 = vmul.f32 %v675, %v1156
  %v1360 = vmul.f32 %v675, %v1160
  %v1361 = vmul.f32 %v680, %v1156
  %v1362 = vmul.f32 %v680, %v1160
  %v1363 = vmul.f32 %v685, %v1156
  %v1364 = vmul.f32 %v685, %v1160
  %v1365 = vmul.f32 %v690, %v1156
  %v1366 = vmul.f32 %v690, %v1160
  %v1367 = vmul.f32 %v695, %v1156
  %v1368 = vmul.f32 %v695, %v1160
  %v1369 = vmul.f32 %v700, %v1156
  %v1370 = vmul.f32 %v700, %v1160
  %v1371 = vmul.f32 %v705, %v1156
  %v1372 = vmul.f32 %v705, %v1160
  %v1373 = vmul.f32 %v710, %v1156
  %v1374 = vmul.f32 %v710, %v1160
  %v1375 = vmul.f32 %v715, %v1156
  %v1376 = vmul.f32 %v715, %v1160
  %v1377 = vmul.f32 %v720, %v1156
  %v1378 = vmul.f32 %v720, %v1160
  %v1379 = vmul.f32 %v725, %v1156
  %v1380 = vmul.f32 %v725, %v1160
  %v1381 = vmul.f32 %v730, %v1156
  %v1382 = vmul.f32 %v730, %v1160
  %v1383 = vmul.f32 %v735, %v1156
  %v1384 = vmul.f32 %v735, %v1160
  %v1385 = vmul.f32 %v740, %v1156
  %v1386 = vmul.f32 %v740, %v1160
  %v1387 = vmul.f32 %v745, %v1156
  %v1388 = vmul.f32 %v745, %v1160
  %v1389 = vmul.f32 %v750, %v1156
  %v1390 = vmul.f32 %v750, %v1160
  %v1391 = vmul.f32 %v755, %v1156
  %v1392 = vmul.f32 %v755, %v1160
  %v1393 = vmul.f32 %v760, %v1156
  %v1394 = vmul.f32 %v760, %v1160
  %v1395 = vmul.f32 %v765, %v1156
  %v1396 = vmul.f32 %v765, %v1160
  %v1397 = vmul.f32 %v770, %v1156
  %v1398 = vmul.f32 %v770, %v1160
  %v1399 = vmul.f32 %v775, %v1156
  %v1400 = vmul.f32 %v775, %v1160
  %v1401 = vmul.f32 %v780, %v1156
  %v1402 = vmul.f32 %v780, %v1160
  %v1403 = vmul.f32 %v785, %v1156
  %v1404 = vmul.f32 %v785, %v1160
  %v1405 = vmul.f32 %v790, %v1156
  %v1406 = vmul.f32 %v790, %v1160
  %v1407 = vmul.f32 %v795, %v1156
  %v1408 = vmul.f32 %v795, %v1160
  %v1409 = vmul.f32 %v800, %v1156
  %v1410 = vmul.f32 %v800, %v1160
  %v1411 = vmul.f32 %v805, %v1156
  %v1412 = vmul.f32 %v805, %v1160
  %v1413 = vmul.f32 %v810, %v1164
  %v1414 = vmul.f32 %v810, %v1168
  %v1415 = vmul.f32 %v815, %v1164
  %v1416 = vmul.f32 %v815, %v1168
  %v1417 = vmul.f32 %v820, %v1164
  %v1418 = vmul.f32 %v820, %v1168
  %v1419 = vmul.f32 %v825, %v1164
  %v1420 = vmul.f32 %v825, %v1168
  %v1421 = vmul.f32 %v830, %v1164
  %v1422 = vmul.f32 %v830, %v1168
  %v1423 = vmul.f32 %v835, %v1164
  %v1424 = vmul.f32 %v835, %v1168
  %v1425 = vmul.f32 %v840, %v1164
  %v1426 = vmul.f32 %v840, %v1168
  %v1427 = vmul.f32 %v845, %v1164
  %v1428 = vmul.f32 %v845, %v1168
  %v1429 = vmul.f32 %v850, %v1164
  %v1430 = vmul.f32 %v850, %v1168
  %v1431 = vmul.f32 %v855, %v1164
  %v1432 = vmul.f32 %v855, %v1168
  %v1433 = vmul.f32 %v860, %v1164
  %v1434 = vmul.f32 %v860, %v1168
  %v1435 = vmul.f32 %v865, %v1164
  %v1436 = vmul.f32 %v865, %v1168
  %v1437 = vmul.f32 %v870, %v1164
  %v1438 = vmul.f32 %v870, %v1168
  %v1439 = vmul.f32 %v875, %v1164
  %v1440 = vmul.f32 %v875, %v1168
  %v1441 = vmul.f32 %v880, %v1164
  %v1442 = vmul.f32 %v880, %v1168
  %v1443 = vmul.f32 %v885, %v1164
  %v1444 = vmul.f32 %v885, %v1168
  %v1445 = vmul.f32 %v890, %v1164
  %v1446 = vmul.f32 %v890, %v1168
  %v1447 = vmul.f32 %v895, %v1164
  %v1448 = vmul.f32 %v895, %v1168
  %v1449 = vmul.f32 %v900, %v1164
  %v1450 = vmul.f32 %v900, %v1168
  %v1451 = vmul.f32 %v905, %v1164
  %v1452 = vmul.f32 %v905, %v1168
  %v1453 = vmul.f32 %v910, %v1164
  %v1454 = vmul.f32 %v910, %v1168
  %v1455 = vmul.f32 %v915, %v1164
  %v1456 = vmul.f32 %v915, %v1168
  %v1457 = vmul.f32 %v920, %v1164
  %v1458 = vmul.f32 %v920, %v1168
  %v1459 = vmul.f32 %v925, %v1164
  %v1460 = vmul.f32 %v925, %v1168
  %v1461 = vmul.f32 %v930, %v1164
  %v1462 = vmul.f32 %v930, %v1168
  %v1463 = vmul.f32 %v935, %v1164
  %v1464 = vmul.f32 %v935, %v1168
  %v1465 = vmul.f32 %v940, %v1164
  %v1466 = vmul.f32 %v940, %v1168
  %v1467 = vmul.f32 %v945, %v1164
  %v1468 = vmul.f32 %v945, %v1168
  %v1469 = vmul.f32 %v950, %v1164
  %v1470 = vmul.f32 %v950, %v1168
  %v1471 = vmul.f32 %v955, %v1164
  %v1472 = vmul.f32 %v955, %v1168
  %v1473 = vmul.f32 %v960, %v1164
  %v1474 = vmul.f32 %v960, %v1168
  %v1475 = vmul.f32 %v965, %v1164
  %v1476 = vmul.f32 %v965, %v1168
  %v1477 = vmul.f32 %v970, %v1164
  %v1478 = vmul.f32 %v970, %v1168
  %v1479 = vmul.f32 %v975, %v1164
  %v1480 = vmul.f32 %v975, %v1168
  %v1481 = vmul.f32 %v980, %v1164
  %v1482 = vmul.f32 %v980, %v1168
  %v1483 = vmul.f32 %v985, %v1164
  %v1484 = vmul.f32 %v985, %v1168
  %v1485 = vmul.f32 %v990, %v1164
  %v1486 = vmul.f32 %v990, %v1168
  %v1487 = vmul.f32 %v995, %v1164
  %v1488 = vmul.f32 %v995, %v1168
  %v1489 = vmul.f32 %v1000, %v1164
  %v1490 = vmul.f32 %v1000, %v1168
  %v1491 = vmul.f32 %v1005, %v1164
  %v1492 = vmul.f32 %v1005, %v1168
  %v1493 = vmul.f32 %v1010, %v1164
  %v1494 = vmul.f32 %v1010, %v1168
  %v1495 = vmul.f32 %v1015, %v1164
  %v1496 = vmul.f32 %v1015, %v1168
  %v1497 = vmul.f32 %v1020, %v1164
  %v1498 = vmul.f32 %v1020, %v1168
  %v1499 = vmul.f32 %v1025, %v1164
  %v1500 = vmul.f32 %v1025, %v1168
  %v1501 = vmul.f32 %v1030, %v1164
  %v1502 = vmul.f32 %v1030, %v1168
  %v1503 = vmul.f32 %v1035, %v1164
  %v1504 = vmul.f32 %v1035, %v1168
  %v1505 = vmul.f32 %v1040, %v1164
  %v1506 = vmul.f32 %v1040, %v1168
  %v1507 = vmul.f32 %v1045, %v1164
  %v1508 = vmul.f32 %v1045, %v1168
  %v1509 = vmul.f32 %v1050, %v1164
  %v1510 = vmul.f32 %v1050, %v1168
  %v1511 = vmul.f32 %v1055, %v1164
  %v1512 = vmul.f32 %v1055, %v1168
  %v1513 = vmul.f32 %v1060, %v1164
  %v1514 = vmul.f32 %v1060, %v1168
  %v1515 = vmul.f32 %v1065, %v1164
  %v1516 = vmul.f32 %v1065, %v1168
  %v1517 = vmul.f32 %v1070, %v1164
  %v1518 = vmul.f32 %v1070, %v1168
  %v1519 = vmul.f32 %v1075, %v1164
  %v1520 = vmul.f32 %v1075, %v1168
  %v1521 = vmul.f32 %v1080, %v1164
  %v1522 = vmul.f32 %v1080, %v1168
  %v1523 = vmul.f32 %v1085, %v1164
  %v1524 = vmul.f32 %v1085, %v1168
  %v1525 = vmul.f32 %v1090, %v1164
  %v1526 = vmul.f32 %v1090, %v1168
  %v1527 = vmul.f32 %v1095, %v1164
  %v1528 = vmul.f32 %v1095, %v1168
  %v1529 = vmul.f32 %v1100, %v1164
  %v1530 = vmul.f32 %v1100, %v1168
  %v1531 = vmul.f32 %v1105, %v1164
  %v1532 = vmul.f32 %v1105, %v1168
  %v1533 = vmul.f32 %v1110, %v1164
  %v1534 = vmul.f32 %v1110, %v1168
  %1535 = vset.pattern.permute.xlu0 1
  %1536 = vperm.xlu0 %1535, %v11
  %v1537 = vpop.permute.xlu0 %1536
  %1539 = vset.pattern.permute.xlu0 1
  %1540 = vperm.xlu0 %1539, %v12
  %v1541 = vpop.permute.xlu0 %1540
  %1543 = vset.pattern.permute.xlu0 1
  %1544 = vperm.xlu0 %1543, %v13
  %v1545 = vpop.permute.xlu0 %1544
  %1547 = vset.pattern.permute.xlu0 1
  %1548 = vperm.xlu0 %1547, %v14
  %v1549 = vpop.permute.xlu0 %1548
  %1551 = vset.pattern.permute.xlu0 1
  %1552 = vperm.xlu0 %1551, %v15
  %v1553 = vpop.permute.xlu0 %1552
  %1555 = vset.pattern.permute.xlu0 1
  %1556 = vperm.xlu0 %1555, %v16
  %v1557 = vpop.permute.xlu0 %1556
  %1559 = vset.pattern.permute.xlu0 1
  %1560 = vperm.xlu0 %1559, %v17
  %v1561 = vpop.permute.xlu0 %1560
  %1563 = vset.pattern.permute.xlu0 1
  %1564 = vperm.xlu0 %1563, %v18
  %v1565 = vpop.permute.xlu0 %1564
  %1567 = vset.pattern.permute.xlu0 1
  %1568 = vperm.xlu0 %1567, %v19
  %v1569 = vpop.permute.xlu0 %1568
  %1571 = vset.pattern.permute.xlu0 1
  %1572 = vperm.xlu0 %1571, %v20
  %v1573 = vpop.permute.xlu0 %1572
  %1575 = vset.pattern.permute.xlu0 1
  %1576 = vperm.xlu0 %1575, %v21
  %v1577 = vpop.permute.xlu0 %1576
  %1579 = vset.pattern.permute.xlu0 1
  %1580 = vperm.xlu0 %1579, %v22
  %v1581 = vpop.permute.xlu0 %1580
  %1583 = vset.pattern.permute.xlu0 1
  %1584 = vperm.xlu0 %1583, %v23
  %v1585 = vpop.permute.xlu0 %1584
  %1587 = vset.pattern.permute.xlu0 1
  %1588 = vperm.xlu0 %1587, %v24
  %v1589 = vpop.permute.xlu0 %1588
  %1591 = vset.pattern.permute.xlu0 1
  %1592 = vperm.xlu0 %1591, %v25
  %v1593 = vpop.permute.xlu0 %1592
  %1595 = vset.pattern.permute.xlu0 1
  %1596 = vperm.xlu0 %1595, %v26
  %v1597 = vpop.permute.xlu0 %1596
  %1599 = vset.pattern.permute.xlu0 1
  %1600 = vperm.xlu0 %1599, %v27
  %v1601 = vpop.permute.xlu0 %1600
  %1603 = vset.pattern.permute.xlu0 1
  %1604 = vperm.xlu0 %1603, %v28
  %v1605 = vpop.permute.xlu0 %1604
  %1607 = vset.pattern.permute.xlu0 1
  %1608 = vperm.xlu0 %1607, %v29
  %v1609 = vpop.permute.xlu0 %1608
  %1611 = vset.pattern.permute.xlu0 1
  %1612 = vperm.xlu0 %1611, %v30
  %v1613 = vpop.permute.xlu0 %1612
  %1615 = vset.pattern.permute.xlu0 1
  %1616 = vperm.xlu0 %1615, %v31
  %v1617 = vpop.permute.xlu0 %1616
  %1619 = vset.pattern.permute.xlu0 1
  %1620 = vperm.xlu0 %1619, %v32
  %v1621 = vpop.permute.xlu0 %1620
  %1623 = vset.pattern.permute.xlu0 1
  %1624 = vperm.xlu0 %1623, %v33
  %v1625 = vpop.permute.xlu0 %1624
  %1627 = vset.pattern.permute.xlu0 1
  %1628 = vperm.xlu0 %1627, %v34
  %v1629 = vpop.permute.xlu0 %1628
  %1631 = vset.pattern.permute.xlu0 1
  %1632 = vperm.xlu0 %1631, %v35
  %v1633 = vpop.permute.xlu0 %1632
  %1635 = vset.pattern.permute.xlu0 1
  %1636 = vperm.xlu0 %1635, %v36
  %v1637 = vpop.permute.xlu0 %1636
  %1639 = vset.pattern.permute.xlu0 1
  %1640 = vperm.xlu0 %1639, %v37
  %v1641 = vpop.permute.xlu0 %1640
  %1643 = vset.pattern.permute.xlu0 1
  %1644 = vperm.xlu0 %1643, %v38
  %v1645 = vpop.permute.xlu0 %1644
  %1647 = vset.pattern.permute.xlu0 1
  %1648 = vperm.xlu0 %1647, %v39
  %v1649 = vpop.permute.xlu0 %1648
  %1651 = vset.pattern.permute.xlu0 1
  %1652 = vperm.xlu0 %1651, %v40
  %v1653 = vpop.permute.xlu0 %1652
  %1655 = vset.pattern.permute.xlu0 1
  %1656 = vperm.xlu0 %1655, %v41
  %v1657 = vpop.permute.xlu0 %1656
  %1659 = vset.pattern.permute.xlu0 1
  %1660 = vperm.xlu0 %1659, %v42
  %v1661 = vpop.permute.xlu0 %1660
  %1663 = vset.pattern.permute.xlu0 1
  %1664 = vperm.xlu0 %1663, %v43
  %v1665 = vpop.permute.xlu0 %1664
  %1667 = vset.pattern.permute.xlu0 1
  %1668 = vperm.xlu0 %1667, %v44
  %v1669 = vpop.permute.xlu0 %1668
  %1671 = vset.pattern.permute.xlu0 1
  %1672 = vperm.xlu0 %1671, %v45
  %v1673 = vpop.permute.xlu0 %1672
  %1675 = vset.pattern.permute.xlu0 1
  %1676 = vperm.xlu0 %1675, %v46
  %v1677 = vpop.permute.xlu0 %1676
  %1679 = vset.pattern.permute.xlu0 1
  %1680 = vperm.xlu0 %1679, %v47
  %v1681 = vpop.permute.xlu0 %1680
  %1683 = vset.pattern.permute.xlu0 1
  %1684 = vperm.xlu0 %1683, %v48
  %v1685 = vpop.permute.xlu0 %1684
  %1687 = vset.pattern.permute.xlu0 1
  %1688 = vperm.xlu0 %1687, %v49
  %v1689 = vpop.permute.xlu0 %1688
  %1691 = vset.pattern.permute.xlu0 1
  %1692 = vperm.xlu0 %1691, %v50
  %v1693 = vpop.permute.xlu0 %1692
  %1695 = vset.pattern.permute.xlu0 1
  %1696 = vperm.xlu0 %1695, %v51
  %v1697 = vpop.permute.xlu0 %1696
  %1699 = vset.pattern.permute.xlu0 1
  %1700 = vperm.xlu0 %1699, %v52
  %v1701 = vpop.permute.xlu0 %1700
  %1703 = vset.pattern.permute.xlu0 1
  %1704 = vperm.xlu0 %1703, %v53
  %v1705 = vpop.permute.xlu0 %1704
  %1707 = vset.pattern.permute.xlu0 1
  %1708 = vperm.xlu0 %1707, %v54
  %v1709 = vpop.permute.xlu0 %1708
  %1711 = vset.pattern.permute.xlu0 1
  %1712 = vperm.xlu0 %1711, %v55
  %v1713 = vpop.permute.xlu0 %1712
  %1715 = vset.pattern.permute.xlu0 1
  %1716 = vperm.xlu0 %1715, %v56
  %v1717 = vpop.permute.xlu0 %1716
  %1719 = vset.pattern.permute.xlu0 1
  %1720 = vperm.xlu0 %1719, %v57
  %v1721 = vpop.permute.xlu0 %1720
  %1723 = vset.pattern.permute.xlu0 1
  %1724 = vperm.xlu0 %1723, %v58
  %v1725 = vpop.permute.xlu0 %1724
  %1727 = vset.pattern.permute.xlu0 1
  %1728 = vperm.xlu0 %1727, %v59
  %v1729 = vpop.permute.xlu0 %1728
  %1731 = vset.pattern.permute.xlu0 1
  %1732 = vperm.xlu0 %1731, %v60
  %v1733 = vpop.permute.xlu0 %1732
  %1735 = vset.pattern.permute.xlu0 1
  %1736 = vperm.xlu0 %1735, %v61
  %v1737 = vpop.permute.xlu0 %1736
  %1739 = vset.pattern.permute.xlu0 1
  %1740 = vperm.xlu0 %1739, %v62
  %v1741 = vpop.permute.xlu0 %1740
  %1743 = vset.pattern.permute.xlu0 1
  %1744 = vperm.xlu0 %1743, %v63
  %v1745 = vpop.permute.xlu0 %1744
  %1747 = vset.pattern.permute.xlu0 1
  %1748 = vperm.xlu0 %1747, %v64
  %v1749 = vpop.permute.xlu0 %1748
  %1751 = vset.pattern.permute.xlu0 1
  %1752 = vperm.xlu0 %1751, %v65
  %v1753 = vpop.permute.xlu0 %1752
  %1755 = vset.pattern.permute.xlu0 1
  %1756 = vperm.xlu0 %1755, %v66
  %v1757 = vpop.permute.xlu0 %1756
  %1759 = vset.pattern.permute.xlu0 1
  %1760 = vperm.xlu0 %1759, %v67
  %v1761 = vpop.permute.xlu0 %1760
  %1763 = vset.pattern.permute.xlu0 1
  %1764 = vperm.xlu0 %1763, %v68
  %v1765 = vpop.permute.xlu0 %1764
  %1767 = vset.pattern.permute.xlu0 1
  %1768 = vperm.xlu0 %1767, %v69
  %v1769 = vpop.permute.xlu0 %1768
  %1771 = vset.pattern.permute.xlu0 1
  %1772 = vperm.xlu0 %1771, %v70
  %v1773 = vpop.permute.xlu0 %1772
  %1775 = vset.pattern.permute.xlu0 1
  %1776 = vperm.xlu0 %1775, %v71
  %v1777 = vpop.permute.xlu0 %1776
  %1779 = vset.pattern.permute.xlu0 1
  %1780 = vperm.xlu0 %1779, %v72
  %v1781 = vpop.permute.xlu0 %1780
  %1783 = vset.pattern.permute.xlu0 1
  %1784 = vperm.xlu0 %1783, %v73
  %v1785 = vpop.permute.xlu0 %1784
  %1787 = vset.pattern.permute.xlu0 1
  %1788 = vperm.xlu0 %1787, %v74
  %v1789 = vpop.permute.xlu0 %1788
  %1791 = vset.pattern.permute.xlu0 1
  %1792 = vperm.xlu0 %1791, %v75
  %v1793 = vpop.permute.xlu0 %1792
  %1795 = vset.pattern.permute.xlu0 1
  %1796 = vperm.xlu0 %1795, %v76
  %v1797 = vpop.permute.xlu0 %1796
  %1799 = vset.pattern.permute.xlu0 1
  %1800 = vperm.xlu0 %1799, %v77
  %v1801 = vpop.permute.xlu0 %1800
  %1803 = vset.pattern.permute.xlu0 1
  %1804 = vperm.xlu0 %1803, %v78
  %v1805 = vpop.permute.xlu0 %1804
  %1807 = vset.pattern.permute.xlu0 1
  %1808 = vperm.xlu0 %1807, %v79
  %v1809 = vpop.permute.xlu0 %1808
  %1811 = vset.pattern.permute.xlu0 1
  %1812 = vperm.xlu0 %1811, %v80
  %v1813 = vpop.permute.xlu0 %1812
  %1815 = vset.pattern.permute.xlu0 1
  %1816 = vperm.xlu0 %1815, %v81
  %v1817 = vpop.permute.xlu0 %1816
  %1819 = vset.pattern.permute.xlu0 1
  %1820 = vperm.xlu0 %1819, %v82
  %v1821 = vpop.permute.xlu0 %1820
  %1823 = vset.pattern.permute.xlu0 1
  %1824 = vperm.xlu0 %1823, %v83
  %v1825 = vpop.permute.xlu0 %1824
  %1827 = vset.pattern.permute.xlu0 1
  %1828 = vperm.xlu0 %1827, %v84
  %v1829 = vpop.permute.xlu0 %1828
  %1831 = vset.pattern.permute.xlu0 1
  %1832 = vperm.xlu0 %1831, %v85
  %v1833 = vpop.permute.xlu0 %1832
  %1835 = vset.pattern.permute.xlu0 1
  %1836 = vperm.xlu0 %1835, %v86
  %v1837 = vpop.permute.xlu0 %1836
  %1839 = vset.pattern.permute.xlu0 1
  %1840 = vperm.xlu0 %1839, %v87
  %v1841 = vpop.permute.xlu0 %1840
  %1843 = vset.pattern.permute.xlu0 1
  %1844 = vperm.xlu0 %1843, %v88
  %v1845 = vpop.permute.xlu0 %1844
  %1847 = vset.pattern.permute.xlu0 1
  %1848 = vperm.xlu0 %1847, %v89
  %v1849 = vpop.permute.xlu0 %1848
  %1851 = vset.pattern.permute.xlu0 1
  %1852 = vperm.xlu0 %1851, %v90
  %v1853 = vpop.permute.xlu0 %1852
  %1855 = vset.pattern.permute.xlu0 1
  %1856 = vperm.xlu0 %1855, %v91
  %v1857 = vpop.permute.xlu0 %1856
  %1859 = vset.pattern.permute.xlu0 1
  %1860 = vperm.xlu0 %1859, %v92
  %v1861 = vpop.permute.xlu0 %1860
  %1863 = vset.pattern.permute.xlu0 1
  %1864 = vperm.xlu0 %1863, %v93
  %v1865 = vpop.permute.xlu0 %1864
  %1867 = vset.pattern.permute.xlu0 1
  %1868 = vperm.xlu0 %1867, %v94
  %v1869 = vpop.permute.xlu0 %1868
  %1871 = vset.pattern.permute.xlu0 1
  %1872 = vperm.xlu0 %1871, %v95
  %v1873 = vpop.permute.xlu0 %1872
  %1875 = vset.pattern.permute.xlu0 1
  %1876 = vperm.xlu0 %1875, %v96
  %v1877 = vpop.permute.xlu0 %1876
  %1879 = vset.pattern.permute.xlu0 1
  %1880 = vperm.xlu0 %1879, %v97
  %v1881 = vpop.permute.xlu0 %1880
  %1883 = vset.pattern.permute.xlu0 1
  %1884 = vperm.xlu0 %1883, %v98
  %v1885 = vpop.permute.xlu0 %1884
  %1887 = vset.pattern.permute.xlu0 1
  %1888 = vperm.xlu0 %1887, %v99
  %v1889 = vpop.permute.xlu0 %1888
  %1891 = vset.pattern.permute.xlu0 1
  %1892 = vperm.xlu0 %1891, %v100
  %v1893 = vpop.permute.xlu0 %1892
  %1895 = vset.pattern.permute.xlu0 1
  %1896 = vperm.xlu0 %1895, %v101
  %v1897 = vpop.permute.xlu0 %1896
  %1899 = vset.pattern.permute.xlu0 1
  %1900 = vperm.xlu0 %1899, %v102
  %v1901 = vpop.permute.xlu0 %1900
  %1903 = vset.pattern.permute.xlu0 1
  %1904 = vperm.xlu0 %1903, %v103
  %v1905 = vpop.permute.xlu0 %1904
  %1907 = vset.pattern.permute.xlu0 1
  %1908 = vperm.xlu0 %1907, %v104
  %v1909 = vpop.permute.xlu0 %1908
  %1911 = vset.pattern.permute.xlu0 1
  %1912 = vperm.xlu0 %1911, %v105
  %v1913 = vpop.permute.xlu0 %1912
  %1915 = vset.pattern.permute.xlu0 1
  %1916 = vperm.xlu0 %1915, %v106
  %v1917 = vpop.permute.xlu0 %1916
  %1919 = vset.pattern.permute.xlu0 1
  %1920 = vperm.xlu0 %1919, %v107
  %v1921 = vpop.permute.xlu0 %1920
  %1923 = vset.pattern.permute.xlu0 1
  %1924 = vperm.xlu0 %1923, %v108
  %v1925 = vpop.permute.xlu0 %1924
  %1927 = vset.pattern.permute.xlu0 1
  %1928 = vperm.xlu0 %1927, %v109
  %v1929 = vpop.permute.xlu0 %1928
  %1931 = vset.pattern.permute.xlu0 1
  %1932 = vperm.xlu0 %1931, %v110
  %v1933 = vpop.permute.xlu0 %1932
  %1935 = vset.pattern.permute.xlu0 1
  %1936 = vperm.xlu0 %1935, %v111
  %v1937 = vpop.permute.xlu0 %1936
  %1939 = vset.pattern.permute.xlu0 1
  %1940 = vperm.xlu0 %1939, %v112
  %v1941 = vpop.permute.xlu0 %1940
  %1943 = vset.pattern.permute.xlu0 1
  %1944 = vperm.xlu0 %1943, %v113
  %v1945 = vpop.permute.xlu0 %1944
  %1947 = vset.pattern.permute.xlu0 1
  %1948 = vperm.xlu0 %1947, %v114
  %v1949 = vpop.permute.xlu0 %1948
  %1951 = vset.pattern.permute.xlu0 1
  %1952 = vperm.xlu0 %1951, %v115
  %v1953 = vpop.permute.xlu0 %1952
  %1955 = vset.pattern.permute.xlu0 1
  %1956 = vperm.xlu0 %1955, %v116
  %v1957 = vpop.permute.xlu0 %1956
  %1959 = vset.pattern.permute.xlu0 1
  %1960 = vperm.xlu0 %1959, %v117
  %v1961 = vpop.permute.xlu0 %1960
  %1963 = vset.pattern.permute.xlu0 1
  %1964 = vperm.xlu0 %1963, %v118
  %v1965 = vpop.permute.xlu0 %1964
  %1967 = vset.pattern.permute.xlu0 1
  %1968 = vperm.xlu0 %1967, %v119
  %v1969 = vpop.permute.xlu0 %1968
  %1971 = vset.pattern.permute.xlu0 1
  %1972 = vperm.xlu0 %1971, %v120
  %v1973 = vpop.permute.xlu0 %1972
  %1975 = vset.pattern.permute.xlu0 1
  %1976 = vperm.xlu0 %1975, %v121
  %v1977 = vpop.permute.xlu0 %1976
  %1979 = vset.pattern.permute.xlu0 1
  %1980 = vperm.xlu0 %1979, %v122
  %v1981 = vpop.permute.xlu0 %1980
  %1983 = vset.pattern.permute.xlu0 1
  %1984 = vperm.xlu0 %1983, %v123
  %v1985 = vpop.permute.xlu0 %1984
  %1987 = vset.pattern.permute.xlu0 1
  %1988 = vperm.xlu0 %1987, %v124
  %v1989 = vpop.permute.xlu0 %1988
  %1991 = vset.pattern.permute.xlu0 1
  %1992 = vperm.xlu0 %1991, %v125
  %v1993 = vpop.permute.xlu0 %1992
  %1995 = vset.pattern.permute.xlu0 1
  %1996 = vperm.xlu0 %1995, %v126
  %v1997 = vpop.permute.xlu0 %1996
  %1999 = vset.pattern.permute.xlu0 1
  %2000 = vperm.xlu0 %1999, %v127
  %v2001 = vpop.permute.xlu0 %2000
  %2003 = vset.pattern.permute.xlu0 1
  %2004 = vperm.xlu0 %2003, %v128
  %v2005 = vpop.permute.xlu0 %2004
  %2007 = vset.pattern.permute.xlu0 1
  %2008 = vperm.xlu0 %2007, %v129
  %v2009 = vpop.permute.xlu0 %2008
  %2011 = vset.pattern.permute.xlu0 1
  %2012 = vperm.xlu0 %2011, %v130
  %v2013 = vpop.permute.xlu0 %2012
  %2015 = vset.pattern.permute.xlu0 1
  %2016 = vperm.xlu0 %2015, %v131
  %v2017 = vpop.permute.xlu0 %2016
  %2019 = vset.pattern.permute.xlu0 1
  %2020 = vperm.xlu0 %2019, %v132
  %v2021 = vpop.permute.xlu0 %2020
  %2023 = vset.pattern.permute.xlu0 1
  %2024 = vperm.xlu0 %2023, %v133
  %v2025 = vpop.permute.xlu0 %2024
  %2027 = vset.pattern.permute.xlu0 1
  %2028 = vperm.xlu0 %2027, %v134
  %v2029 = vpop.permute.xlu0 %2028
  %2031 = vset.pattern.permute.xlu0 1
  %2032 = vperm.xlu0 %2031, %v135
  %v2033 = vpop.permute.xlu0 %2032
  %2035 = vset.pattern.permute.xlu0 1
  %2036 = vperm.xlu0 %2035, %v136
  %v2037 = vpop.permute.xlu0 %2036
  %2039 = vset.pattern.permute.xlu0 1
  %2040 = vperm.xlu0 %2039, %v137
  %v2041 = vpop.permute.xlu0 %2040
  %2043 = vset.pattern.permute.xlu0 1
  %2044 = vperm.xlu0 %2043, %v138
  %v2045 = vpop.permute.xlu0 %2044
  %2047 = vset.pattern.permute.xlu0 1
  %2048 = vperm.xlu0 %2047, %v139
  %v2049 = vpop.permute.xlu0 %2048
  %2051 = vset.pattern.permute.xlu0 1
  %2052 = vperm.xlu0 %2051, %v140
  %v2053 = vpop.permute.xlu0 %2052
  %2055 = vset.pattern.permute.xlu0 1
  %2056 = vperm.xlu0 %2055, %v141
  %v2057 = vpop.permute.xlu0 %2056
  %2059 = vset.pattern.permute.xlu0 1
  %2060 = vperm.xlu0 %2059, %v142
  %v2061 = vpop.permute.xlu0 %2060
  %2063 = vset.pattern.permute.xlu0 1
  %2064 = vperm.xlu0 %2063, %v143
  %v2065 = vpop.permute.xlu0 %2064
  %2067 = vset.pattern.permute.xlu0 1
  %2068 = vperm.xlu0 %2067, %v144
  %v2069 = vpop.permute.xlu0 %2068
  %2071 = vset.pattern.permute.xlu0 1
  %2072 = vperm.xlu0 %2071, %v145
  %v2073 = vpop.permute.xlu0 %2072
  %2075 = vset.pattern.permute.xlu0 1
  %2076 = vperm.xlu0 %2075, %v146
  %v2077 = vpop.permute.xlu0 %2076
  %2079 = vset.pattern.permute.xlu0 1
  %2080 = vperm.xlu0 %2079, %v147
  %v2081 = vpop.permute.xlu0 %2080
  %2083 = vset.pattern.permute.xlu0 1
  %2084 = vperm.xlu0 %2083, %v148
  %v2085 = vpop.permute.xlu0 %2084
  %2087 = vset.pattern.permute.xlu0 1
  %2088 = vperm.xlu0 %2087, %v149
  %v2089 = vpop.permute.xlu0 %2088
  %2091 = vset.pattern.permute.xlu0 1
  %2092 = vperm.xlu0 %2091, %v150
  %v2093 = vpop.permute.xlu0 %2092
  %2095 = vset.pattern.permute.xlu0 1
  %2096 = vperm.xlu0 %2095, %v151
  %v2097 = vpop.permute.xlu0 %2096
  %2099 = vset.pattern.permute.xlu0 1
  %2100 = vperm.xlu0 %2099, %v152
  %v2101 = vpop.permute.xlu0 %2100
  %2103 = vset.pattern.permute.xlu0 1
  %2104 = vperm.xlu0 %2103, %v153
  %v2105 = vpop.permute.xlu0 %2104
  %2107 = vset.pattern.permute.xlu0 1
  %2108 = vperm.xlu0 %2107, %v154
  %v2109 = vpop.permute.xlu0 %2108
  %2111 = vset.pattern.permute.xlu0 1
  %2112 = vperm.xlu0 %2111, %v155
  %v2113 = vpop.permute.xlu0 %2112
  %2115 = vset.pattern.permute.xlu0 1
  %2116 = vperm.xlu0 %2115, %v156
  %v2117 = vpop.permute.xlu0 %2116
  %2119 = vset.pattern.permute.xlu0 1
  %2120 = vperm.xlu0 %2119, %v157
  %v2121 = vpop.permute.xlu0 %2120
  %2123 = vset.pattern.permute.xlu0 1
  %2124 = vperm.xlu0 %2123, %v158
  %v2125 = vpop.permute.xlu0 %2124
  %2127 = vset.pattern.permute.xlu0 1
  %2128 = vperm.xlu0 %2127, %v159
  %v2129 = vpop.permute.xlu0 %2128
  %2131 = vset.pattern.permute.xlu0 1
  %2132 = vperm.xlu0 %2131, %v160
  %v2133 = vpop.permute.xlu0 %2132
  %2135 = vset.pattern.permute.xlu0 1
  %2136 = vperm.xlu0 %2135, %v161
  %v2137 = vpop.permute.xlu0 %2136
  %2139 = vset.pattern.permute.xlu0 1
  %2140 = vperm.xlu0 %2139, %v162
  %v2141 = vpop.permute.xlu0 %2140
  %2143 = vset.pattern.permute.xlu0 1
  %2144 = vperm.xlu0 %2143, %v163
  %v2145 = vpop.permute.xlu0 %2144
  %2147 = vset.pattern.permute.xlu0 1
  %2148 = vperm.xlu0 %2147, %v164
  %v2149 = vpop.permute.xlu0 %2148
  %2151 = vset.pattern.permute.xlu0 1
  %2152 = vperm.xlu0 %2151, %v165
  %v2153 = vpop.permute.xlu0 %2152
  %2155 = vset.pattern.permute.xlu0 1
  %2156 = vperm.xlu0 %2155, %v166
  %v2157 = vpop.permute.xlu0 %2156
  %2159 = vset.pattern.permute.xlu0 1
  %2160 = vperm.xlu0 %2159, %v167
  %v2161 = vpop.permute.xlu0 %2160
  %2163 = vset.pattern.permute.xlu0 1
  %2164 = vperm.xlu0 %2163, %v168
  %v2165 = vpop.permute.xlu0 %2164
  %2167 = vset.pattern.permute.xlu0 1
  %2168 = vperm.xlu0 %2167, %v169
  %v2169 = vpop.permute.xlu0 %2168
  %2171 = vset.pattern.permute.xlu0 1
  %2172 = vperm.xlu0 %2171, %v170
  %v2173 = vpop.permute.xlu0 %2172
  %2175 = vset.pattern.permute.xlu0 1
  %2176 = vperm.xlu0 %2175, %v171
  %v2177 = vpop.permute.xlu0 %2176
  %2179 = vset.pattern.permute.xlu0 1
  %2180 = vperm.xlu0 %2179, %v172
  %v2181 = vpop.permute.xlu0 %2180
  %2183 = vset.pattern.permute.xlu0 1
  %2184 = vperm.xlu0 %2183, %v173
  %v2185 = vpop.permute.xlu0 %2184
  %2187 = vset.pattern.permute.xlu0 1
  %2188 = vperm.xlu0 %2187, %v174
  %v2189 = vpop.permute.xlu0 %2188
  %2191 = vset.pattern.permute.xlu0 1
  %2192 = vperm.xlu0 %2191, %v175
  %v2193 = vpop.permute.xlu0 %2192
  %2195 = vset.pattern.permute.xlu0 1
  %2196 = vperm.xlu0 %2195, %v176
  %v2197 = vpop.permute.xlu0 %2196
  %2199 = vset.pattern.permute.xlu0 1
  %2200 = vperm.xlu0 %2199, %v177
  %v2201 = vpop.permute.xlu0 %2200
  %2203 = vset.pattern.permute.xlu0 1
  %2204 = vperm.xlu0 %2203, %v178
  %v2205 = vpop.permute.xlu0 %2204
  %2207 = vset.pattern.permute.xlu0 1
  %2208 = vperm.xlu0 %2207, %v179
  %v2209 = vpop.permute.xlu0 %2208
  %2211 = vset.pattern.permute.xlu0 1
  %2212 = vperm.xlu0 %2211, %v180
  %v2213 = vpop.permute.xlu0 %2212
  %2215 = vset.pattern.permute.xlu0 1
  %2216 = vperm.xlu0 %2215, %v181
  %v2217 = vpop.permute.xlu0 %2216
  %2219 = vset.pattern.permute.xlu0 1
  %2220 = vperm.xlu0 %2219, %v182
  %v2221 = vpop.permute.xlu0 %2220
  %2223 = vset.pattern.permute.xlu0 1
  %2224 = vperm.xlu0 %2223, %v183
  %v2225 = vpop.permute.xlu0 %2224
  %2227 = vset.pattern.permute.xlu0 1
  %2228 = vperm.xlu0 %2227, %v184
  %v2229 = vpop.permute.xlu0 %2228
  %2231 = vset.pattern.permute.xlu0 1
  %2232 = vperm.xlu0 %2231, %v185
  %v2233 = vpop.permute.xlu0 %2232
  %2235 = vset.pattern.permute.xlu0 1
  %2236 = vperm.xlu0 %2235, %v186
  %v2237 = vpop.permute.xlu0 %2236
  %2239 = vset.pattern.permute.xlu0 1
  %2240 = vperm.xlu0 %2239, %v187
  %v2241 = vpop.permute.xlu0 %2240
  %2243 = vset.pattern.permute.xlu0 1
  %2244 = vperm.xlu0 %2243, %v188
  %v2245 = vpop.permute.xlu0 %2244
  %2247 = vset.pattern.permute.xlu0 1
  %2248 = vperm.xlu0 %2247, %v189
  %v2249 = vpop.permute.xlu0 %2248
  %2251 = vset.pattern.permute.xlu0 1
  %2252 = vperm.xlu0 %2251, %v190
  %v2253 = vpop.permute.xlu0 %2252
  %2255 = vset.pattern.permute.xlu0 1
  %2256 = vperm.xlu0 %2255, %v191
  %v2257 = vpop.permute.xlu0 %2256
  %2259 = vset.pattern.permute.xlu0 1
  %2260 = vperm.xlu0 %2259, %v192
  %v2261 = vpop.permute.xlu0 %2260
  %2263 = vset.pattern.permute.xlu0 1
  %2264 = vperm.xlu0 %2263, %v193
  %v2265 = vpop.permute.xlu0 %2264
  %v2267 = vlaneseq
  %v2268 = vshrl.u32 %v2267, 7
  %v2269 = vsub.s32 1, %v2268
  %v2270 = vrot.slane %v194, %v2269
  %v2271 = vlaneseq
  %v2272 = vshrl.u32 %v2271, 7
  %v2273 = vsub.s32 3, %v2272
  %v2274 = vrot.slane %v194, %v2273
  %v2275 = vlaneseq
  %v2276 = vshrl.u32 %v2275, 7
  %v2277 = vsub.s32 1, %v2276
  %v2278 = vrot.slane %v195, %v2277
  %v2279 = vlaneseq
  %v2280 = vshrl.u32 %v2279, 7
  %v2281 = vsub.s32 3, %v2280
  %v2282 = vrot.slane %v195, %v2281
  %v2283 = vlaneseq
  %v2284 = vshrl.u32 %v2283, 7
  %v2285 = vsub.s32 1, %v2284
  %v2286 = vrot.slane %v196, %v2285
  %v2287 = vlaneseq
  %v2288 = vshrl.u32 %v2287, 7
  %v2289 = vsub.s32 3, %v2288
  %v2290 = vrot.slane %v196, %v2289
  %v2297 = vlaneseq
  %v2298 = vshrl.u32 %v2297, 7
  %v2299 = vsub.s32 1, %v2298
  %v2300 = vrot.slane %v2270, %v2299
  %v2301 = vlaneseq
  %v2302 = vshrl.u32 %v2301, 7
  %v2303 = vsub.s32 1, %v2302
  %v2304 = vrot.slane %v2274, %v2303
  %v2305 = vlaneseq
  %v2306 = vshrl.u32 %v2305, 7
  %v2307 = vsub.s32 1, %v2306
  %v2308 = vrot.slane %v2278, %v2307
  %v2309 = vlaneseq
  %v2310 = vshrl.u32 %v2309, 7
  %v2311 = vsub.s32 1, %v2310
  %v2312 = vrot.slane %v2282, %v2311
  %v2313 = vlaneseq
  %v2314 = vshrl.u32 %v2313, 7
  %v2315 = vsub.s32 1, %v2314
  %v2316 = vrot.slane %v2286, %v2315
  %v2317 = vlaneseq
  %v2318 = vshrl.u32 %v2317, 7
  %v2319 = vsub.s32 1, %v2318
  %v2320 = vrot.slane %v2290, %v2319
  %v2321 = vmul.f32 %v1537, %v2300
  %v2322 = vmul.f32 %v1537, %v2304
  %v2323 = vmul.f32 %v1541, %v2300
  %v2324 = vmul.f32 %v1541, %v2304
  %v2325 = vmul.f32 %v1545, %v2300
  %v2326 = vmul.f32 %v1545, %v2304
  %v2327 = vmul.f32 %v1549, %v2300
  %v2328 = vmul.f32 %v1549, %v2304
  %v2329 = vmul.f32 %v1553, %v2300
  %v2330 = vmul.f32 %v1553, %v2304
  %v2331 = vmul.f32 %v1557, %v2300
  %v2332 = vmul.f32 %v1557, %v2304
  %v2333 = vmul.f32 %v1561, %v2300
  %v2334 = vmul.f32 %v1561, %v2304
  %v2335 = vmul.f32 %v1565, %v2300
  %v2336 = vmul.f32 %v1565, %v2304
  %v2337 = vmul.f32 %v1569, %v2300
  %v2338 = vmul.f32 %v1569, %v2304
  %v2339 = vmul.f32 %v1573, %v2300
  %v2340 = vmul.f32 %v1573, %v2304
  %v2341 = vmul.f32 %v1577, %v2300
  %v2342 = vmul.f32 %v1577, %v2304
  %v2343 = vmul.f32 %v1581, %v2300
  %v2344 = vmul.f32 %v1581, %v2304
  %v2345 = vmul.f32 %v1585, %v2300
  %v2346 = vmul.f32 %v1585, %v2304
  %v2347 = vmul.f32 %v1589, %v2300
  %v2348 = vmul.f32 %v1589, %v2304
  %v2349 = vmul.f32 %v1593, %v2300
  %v2350 = vmul.f32 %v1593, %v2304
  %v2351 = vmul.f32 %v1597, %v2300
  %v2352 = vmul.f32 %v1597, %v2304
  %v2353 = vmul.f32 %v1601, %v2300
  %v2354 = vmul.f32 %v1601, %v2304
  %v2355 = vmul.f32 %v1605, %v2300
  %v2356 = vmul.f32 %v1605, %v2304
  %v2357 = vmul.f32 %v1609, %v2300
  %v2358 = vmul.f32 %v1609, %v2304
  %v2359 = vmul.f32 %v1613, %v2300
  %v2360 = vmul.f32 %v1613, %v2304
  %v2361 = vmul.f32 %v1617, %v2300
  %v2362 = vmul.f32 %v1617, %v2304
  %v2363 = vmul.f32 %v1621, %v2300
  %v2364 = vmul.f32 %v1621, %v2304
  %v2365 = vmul.f32 %v1625, %v2300
  %v2366 = vmul.f32 %v1625, %v2304
  %v2367 = vmul.f32 %v1629, %v2300
  %v2368 = vmul.f32 %v1629, %v2304
  %v2369 = vmul.f32 %v1633, %v2300
  %v2370 = vmul.f32 %v1633, %v2304
  %v2371 = vmul.f32 %v1637, %v2300
  %v2372 = vmul.f32 %v1637, %v2304
  %v2373 = vmul.f32 %v1641, %v2300
  %v2374 = vmul.f32 %v1641, %v2304
  %v2375 = vmul.f32 %v1645, %v2300
  %v2376 = vmul.f32 %v1645, %v2304
  %v2377 = vmul.f32 %v1649, %v2300
  %v2378 = vmul.f32 %v1649, %v2304
  %v2379 = vmul.f32 %v1653, %v2300
  %v2380 = vmul.f32 %v1653, %v2304
  %v2381 = vmul.f32 %v1657, %v2300
  %v2382 = vmul.f32 %v1657, %v2304
  %v2383 = vmul.f32 %v1661, %v2300
  %v2384 = vmul.f32 %v1661, %v2304
  %v2385 = vmul.f32 %v1665, %v2300
  %v2386 = vmul.f32 %v1665, %v2304
  %v2387 = vmul.f32 %v1669, %v2300
  %v2388 = vmul.f32 %v1669, %v2304
  %v2389 = vmul.f32 %v1673, %v2300
  %v2390 = vmul.f32 %v1673, %v2304
  %v2391 = vmul.f32 %v1677, %v2300
  %v2392 = vmul.f32 %v1677, %v2304
  %v2393 = vmul.f32 %v1681, %v2300
  %v2394 = vmul.f32 %v1681, %v2304
  %v2395 = vmul.f32 %v1685, %v2300
  %v2396 = vmul.f32 %v1685, %v2304
  %v2397 = vmul.f32 %v1689, %v2300
  %v2398 = vmul.f32 %v1689, %v2304
  %v2399 = vmul.f32 %v1693, %v2300
  %v2400 = vmul.f32 %v1693, %v2304
  %v2401 = vmul.f32 %v1697, %v2300
  %v2402 = vmul.f32 %v1697, %v2304
  %v2403 = vmul.f32 %v1701, %v2300
  %v2404 = vmul.f32 %v1701, %v2304
  %v2405 = vmul.f32 %v1705, %v2300
  %v2406 = vmul.f32 %v1705, %v2304
  %v2407 = vmul.f32 %v1709, %v2300
  %v2408 = vmul.f32 %v1709, %v2304
  %v2409 = vmul.f32 %v1713, %v2300
  %v2410 = vmul.f32 %v1713, %v2304
  %v2411 = vmul.f32 %v1717, %v2300
  %v2412 = vmul.f32 %v1717, %v2304
  %v2413 = vmul.f32 %v1721, %v2300
  %v2414 = vmul.f32 %v1721, %v2304
  %v2415 = vmul.f32 %v1725, %v2300
  %v2416 = vmul.f32 %v1725, %v2304
  %v2417 = vmul.f32 %v1729, %v2300
  %v2418 = vmul.f32 %v1729, %v2304
  %v2419 = vmul.f32 %v1733, %v2300
  %v2420 = vmul.f32 %v1733, %v2304
  %v2421 = vmul.f32 %v1737, %v2300
  %v2422 = vmul.f32 %v1737, %v2304
  %v2423 = vmul.f32 %v1741, %v2300
  %v2424 = vmul.f32 %v1741, %v2304
  %v2425 = vmul.f32 %v1745, %v2300
  %v2426 = vmul.f32 %v1745, %v2304
  %v2427 = vmul.f32 %v1749, %v2300
  %v2428 = vmul.f32 %v1749, %v2304
  %v2429 = vmul.f32 %v1753, %v2300
  %v2430 = vmul.f32 %v1753, %v2304
  %v2431 = vmul.f32 %v1757, %v2300
  %v2432 = vmul.f32 %v1757, %v2304
  %v2433 = vmul.f32 %v1761, %v2300
  %v2434 = vmul.f32 %v1761, %v2304
  %v2435 = vmul.f32 %v1765, %v2300
  %v2436 = vmul.f32 %v1765, %v2304
  %v2437 = vmul.f32 %v1769, %v2300
  %v2438 = vmul.f32 %v1769, %v2304
  %v2439 = vmul.f32 %v1773, %v2300
  %v2440 = vmul.f32 %v1773, %v2304
  %v2441 = vmul.f32 %v1777, %v2300
  %v2442 = vmul.f32 %v1777, %v2304
  %v2443 = vmul.f32 %v1781, %v2308
  %v2444 = vmul.f32 %v1781, %v2312
  %v2445 = vmul.f32 %v1785, %v2308
  %v2446 = vmul.f32 %v1785, %v2312
  %v2447 = vmul.f32 %v1789, %v2308
  %v2448 = vmul.f32 %v1789, %v2312
  %v2449 = vmul.f32 %v1793, %v2308
  %v2450 = vmul.f32 %v1793, %v2312
  %v2451 = vmul.f32 %v1797, %v2308
  %v2452 = vmul.f32 %v1797, %v2312
  %v2453 = vmul.f32 %v1801, %v2308
  %v2454 = vmul.f32 %v1801, %v2312
  %v2455 = vmul.f32 %v1805, %v2308
  %v2456 = vmul.f32 %v1805, %v2312
  %v2457 = vmul.f32 %v1809, %v2308
  %v2458 = vmul.f32 %v1809, %v2312
  %v2459 = vmul.f32 %v1813, %v2308
  %v2460 = vmul.f32 %v1813, %v2312
  %v2461 = vmul.f32 %v1817, %v2308
  %v2462 = vmul.f32 %v1817, %v2312
  %v2463 = vmul.f32 %v1821, %v2308
  %v2464 = vmul.f32 %v1821, %v2312
  %v2465 = vmul.f32 %v1825, %v2308
  %v2466 = vmul.f32 %v1825, %v2312
  %v2467 = vmul.f32 %v1829, %v2308
  %v2468 = vmul.f32 %v1829, %v2312
  %v2469 = vmul.f32 %v1833, %v2308
  %v2470 = vmul.f32 %v1833, %v2312
  %v2471 = vmul.f32 %v1837, %v2308
  %v2472 = vmul.f32 %v1837, %v2312
  %v2473 = vmul.f32 %v1841, %v2308
  %v2474 = vmul.f32 %v1841, %v2312
  %v2475 = vmul.f32 %v1845, %v2308
  %v2476 = vmul.f32 %v1845, %v2312
  %v2477 = vmul.f32 %v1849, %v2308
  %v2478 = vmul.f32 %v1849, %v2312
  %v2479 = vmul.f32 %v1853, %v2308
  %v2480 = vmul.f32 %v1853, %v2312
  %v2481 = vmul.f32 %v1857, %v2308
  %v2482 = vmul.f32 %v1857, %v2312
  %v2483 = vmul.f32 %v1861, %v2308
  %v2484 = vmul.f32 %v1861, %v2312
  %v2485 = vmul.f32 %v1865, %v2308
  %v2486 = vmul.f32 %v1865, %v2312
  %v2487 = vmul.f32 %v1869, %v2308
  %v2488 = vmul.f32 %v1869, %v2312
  %v2489 = vmul.f32 %v1873, %v2308
  %v2490 = vmul.f32 %v1873, %v2312
  %v2491 = vmul.f32 %v1877, %v2308
  %v2492 = vmul.f32 %v1877, %v2312
  %v2493 = vmul.f32 %v1881, %v2308
  %v2494 = vmul.f32 %v1881, %v2312
  %v2495 = vmul.f32 %v1885, %v2308
  %v2496 = vmul.f32 %v1885, %v2312
  %v2497 = vmul.f32 %v1889, %v2308
  %v2498 = vmul.f32 %v1889, %v2312
  %v2499 = vmul.f32 %v1893, %v2308
  %v2500 = vmul.f32 %v1893, %v2312
  %v2501 = vmul.f32 %v1897, %v2308
  %v2502 = vmul.f32 %v1897, %v2312
  %v2503 = vmul.f32 %v1901, %v2308
  %v2504 = vmul.f32 %v1901, %v2312
  %v2505 = vmul.f32 %v1905, %v2308
  %v2506 = vmul.f32 %v1905, %v2312
  %v2507 = vmul.f32 %v1909, %v2308
  %v2508 = vmul.f32 %v1909, %v2312
  %v2509 = vmul.f32 %v1913, %v2308
  %v2510 = vmul.f32 %v1913, %v2312
  %v2511 = vmul.f32 %v1917, %v2308
  %v2512 = vmul.f32 %v1917, %v2312
  %v2513 = vmul.f32 %v1921, %v2308
  %v2514 = vmul.f32 %v1921, %v2312
  %v2515 = vmul.f32 %v1925, %v2308
  %v2516 = vmul.f32 %v1925, %v2312
  %v2517 = vmul.f32 %v1929, %v2308
  %v2518 = vmul.f32 %v1929, %v2312
  %v2519 = vmul.f32 %v1933, %v2308
  %v2520 = vmul.f32 %v1933, %v2312
  %v2521 = vmul.f32 %v1937, %v2308
  %v2522 = vmul.f32 %v1937, %v2312
  %v2523 = vmul.f32 %v1941, %v2308
  %v2524 = vmul.f32 %v1941, %v2312
  %v2525 = vmul.f32 %v1945, %v2308
  %v2526 = vmul.f32 %v1945, %v2312
  %v2527 = vmul.f32 %v1949, %v2308
  %v2528 = vmul.f32 %v1949, %v2312
  %v2529 = vmul.f32 %v1953, %v2308
  %v2530 = vmul.f32 %v1953, %v2312
  %v2531 = vmul.f32 %v1957, %v2308
  %v2532 = vmul.f32 %v1957, %v2312
  %v2533 = vmul.f32 %v1961, %v2308
  %v2534 = vmul.f32 %v1961, %v2312
  %v2535 = vmul.f32 %v1965, %v2308
  %v2536 = vmul.f32 %v1965, %v2312
  %v2537 = vmul.f32 %v1969, %v2308
  %v2538 = vmul.f32 %v1969, %v2312
  %v2539 = vmul.f32 %v1973, %v2308
  %v2540 = vmul.f32 %v1973, %v2312
  %v2541 = vmul.f32 %v1977, %v2308
  %v2542 = vmul.f32 %v1977, %v2312
  %v2543 = vmul.f32 %v1981, %v2308
  %v2544 = vmul.f32 %v1981, %v2312
  %v2545 = vmul.f32 %v1985, %v2308
  %v2546 = vmul.f32 %v1985, %v2312
  %v2547 = vmul.f32 %v1989, %v2308
  %v2548 = vmul.f32 %v1989, %v2312
  %v2549 = vmul.f32 %v1993, %v2308
  %v2550 = vmul.f32 %v1993, %v2312
  %v2551 = vmul.f32 %v1997, %v2308
  %v2552 = vmul.f32 %v1997, %v2312
  %v2553 = vmul.f32 %v2001, %v2308
  %v2554 = vmul.f32 %v2001, %v2312
  %v2555 = vmul.f32 %v2005, %v2308
  %v2556 = vmul.f32 %v2005, %v2312
  %v2557 = vmul.f32 %v2009, %v2308
  %v2558 = vmul.f32 %v2009, %v2312
  %v2559 = vmul.f32 %v2013, %v2308
  %v2560 = vmul.f32 %v2013, %v2312
  %v2561 = vmul.f32 %v2017, %v2308
  %v2562 = vmul.f32 %v2017, %v2312
  %v2563 = vmul.f32 %v2021, %v2308
  %v2564 = vmul.f32 %v2021, %v2312
  %v2565 = vmul.f32 %v2025, %v2316
  %v2566 = vmul.f32 %v2025, %v2320
  %v2567 = vmul.f32 %v2029, %v2316
  %v2568 = vmul.f32 %v2029, %v2320
  %v2569 = vmul.f32 %v2033, %v2316
  %v2570 = vmul.f32 %v2033, %v2320
  %v2571 = vmul.f32 %v2037, %v2316
  %v2572 = vmul.f32 %v2037, %v2320
  %v2573 = vmul.f32 %v2041, %v2316
  %v2574 = vmul.f32 %v2041, %v2320
  %v2575 = vmul.f32 %v2045, %v2316
  %v2576 = vmul.f32 %v2045, %v2320
  %v2577 = vmul.f32 %v2049, %v2316
  %v2578 = vmul.f32 %v2049, %v2320
  %v2579 = vmul.f32 %v2053, %v2316
  %v2580 = vmul.f32 %v2053, %v2320
  %v2581 = vmul.f32 %v2057, %v2316
  %v2582 = vmul.f32 %v2057, %v2320
  %v2583 = vmul.f32 %v2061, %v2316
  %v2584 = vmul.f32 %v2061, %v2320
  %v2585 = vmul.f32 %v2065, %v2316
  %v2586 = vmul.f32 %v2065, %v2320
  %v2587 = vmul.f32 %v2069, %v2316
  %v2588 = vmul.f32 %v2069, %v2320
  %v2589 = vmul.f32 %v2073, %v2316
  %v2590 = vmul.f32 %v2073, %v2320
  %v2591 = vmul.f32 %v2077, %v2316
  %v2592 = vmul.f32 %v2077, %v2320
  %v2593 = vmul.f32 %v2081, %v2316
  %v2594 = vmul.f32 %v2081, %v2320
  %v2595 = vmul.f32 %v2085, %v2316
  %v2596 = vmul.f32 %v2085, %v2320
  %v2597 = vmul.f32 %v2089, %v2316
  %v2598 = vmul.f32 %v2089, %v2320
  %v2599 = vmul.f32 %v2093, %v2316
  %v2600 = vmul.f32 %v2093, %v2320
  %v2601 = vmul.f32 %v2097, %v2316
  %v2602 = vmul.f32 %v2097, %v2320
  %v2603 = vmul.f32 %v2101, %v2316
  %v2604 = vmul.f32 %v2101, %v2320
  %v2605 = vmul.f32 %v2105, %v2316
  %v2606 = vmul.f32 %v2105, %v2320
  %v2607 = vmul.f32 %v2109, %v2316
  %v2608 = vmul.f32 %v2109, %v2320
  %v2609 = vmul.f32 %v2113, %v2316
  %v2610 = vmul.f32 %v2113, %v2320
  %v2611 = vmul.f32 %v2117, %v2316
  %v2612 = vmul.f32 %v2117, %v2320
  %v2613 = vmul.f32 %v2121, %v2316
  %v2614 = vmul.f32 %v2121, %v2320
  %v2615 = vmul.f32 %v2125, %v2316
  %v2616 = vmul.f32 %v2125, %v2320
  %v2617 = vmul.f32 %v2129, %v2316
  %v2618 = vmul.f32 %v2129, %v2320
  %v2619 = vmul.f32 %v2133, %v2316
  %v2620 = vmul.f32 %v2133, %v2320
  %v2621 = vmul.f32 %v2137, %v2316
  %v2622 = vmul.f32 %v2137, %v2320
  %v2623 = vmul.f32 %v2141, %v2316
  %v2624 = vmul.f32 %v2141, %v2320
  %v2625 = vmul.f32 %v2145, %v2316
  %v2626 = vmul.f32 %v2145, %v2320
  %v2627 = vmul.f32 %v2149, %v2316
  %v2628 = vmul.f32 %v2149, %v2320
  %v2629 = vmul.f32 %v2153, %v2316
  %v2630 = vmul.f32 %v2153, %v2320
  %v2631 = vmul.f32 %v2157, %v2316
  %v2632 = vmul.f32 %v2157, %v2320
  %v2633 = vmul.f32 %v2161, %v2316
  %v2634 = vmul.f32 %v2161, %v2320
  %v2635 = vmul.f32 %v2165, %v2316
  %v2636 = vmul.f32 %v2165, %v2320
  %v2637 = vmul.f32 %v2169, %v2316
  %v2638 = vmul.f32 %v2169, %v2320
  %v2639 = vmul.f32 %v2173, %v2316
  %v2640 = vmul.f32 %v2173, %v2320
  %v2641 = vmul.f32 %v2177, %v2316
  %v2642 = vmul.f32 %v2177, %v2320
  %v2643 = vmul.f32 %v2181, %v2316
  %v2644 = vmul.f32 %v2181, %v2320
  %v2645 = vmul.f32 %v2185, %v2316
  %v2646 = vmul.f32 %v2185, %v2320
  %v2647 = vmul.f32 %v2189, %v2316
  %v2648 = vmul.f32 %v2189, %v2320
  %v2649 = vmul.f32 %v2193, %v2316
  %v2650 = vmul.f32 %v2193, %v2320
  %v2651 = vmul.f32 %v2197, %v2316
  %v2652 = vmul.f32 %v2197, %v2320
  %v2653 = vmul.f32 %v2201, %v2316
  %v2654 = vmul.f32 %v2201, %v2320
  %v2655 = vmul.f32 %v2205, %v2316
  %v2656 = vmul.f32 %v2205, %v2320
  %v2657 = vmul.f32 %v2209, %v2316
  %v2658 = vmul.f32 %v2209, %v2320
  %v2659 = vmul.f32 %v2213, %v2316
  %v2660 = vmul.f32 %v2213, %v2320
  %v2661 = vmul.f32 %v2217, %v2316
  %v2662 = vmul.f32 %v2217, %v2320
  %v2663 = vmul.f32 %v2221, %v2316
  %v2664 = vmul.f32 %v2221, %v2320
  %v2665 = vmul.f32 %v2225, %v2316
  %v2666 = vmul.f32 %v2225, %v2320
  %v2667 = vmul.f32 %v2229, %v2316
  %v2668 = vmul.f32 %v2229, %v2320
  %v2669 = vmul.f32 %v2233, %v2316
  %v2670 = vmul.f32 %v2233, %v2320
  %v2671 = vmul.f32 %v2237, %v2316
  %v2672 = vmul.f32 %v2237, %v2320
  %v2673 = vmul.f32 %v2241, %v2316
  %v2674 = vmul.f32 %v2241, %v2320
  %v2675 = vmul.f32 %v2245, %v2316
  %v2676 = vmul.f32 %v2245, %v2320
  %v2677 = vmul.f32 %v2249, %v2316
  %v2678 = vmul.f32 %v2249, %v2320
  %v2679 = vmul.f32 %v2253, %v2316
  %v2680 = vmul.f32 %v2253, %v2320
  %v2681 = vmul.f32 %v2257, %v2316
  %v2682 = vmul.f32 %v2257, %v2320
  %v2683 = vmul.f32 %v2261, %v2316
  %v2684 = vmul.f32 %v2261, %v2320
  %v2685 = vmul.f32 %v2265, %v2316
  %v2686 = vmul.f32 %v2265, %v2320
  %v2687 = vadd.f32 %v1169, %v2321
  %v2688 = vadd.f32 %v1170, %v2322
  %v2689 = vadd.f32 %v1171, %v2323
  %v2690 = vadd.f32 %v1172, %v2324
  %v2691 = vadd.f32 %v1173, %v2325
  %v2692 = vadd.f32 %v1174, %v2326
  %v2693 = vadd.f32 %v1175, %v2327
  %v2694 = vadd.f32 %v1176, %v2328
  %v2695 = vadd.f32 %v1177, %v2329
  %v2696 = vadd.f32 %v1178, %v2330
  %v2697 = vadd.f32 %v1179, %v2331
  %v2698 = vadd.f32 %v1180, %v2332
  %v2699 = vadd.f32 %v1181, %v2333
  %v2700 = vadd.f32 %v1182, %v2334
  %v2701 = vadd.f32 %v1183, %v2335
  %v2702 = vadd.f32 %v1184, %v2336
  %v2703 = vadd.f32 %v1185, %v2337
  %v2704 = vadd.f32 %v1186, %v2338
  %v2705 = vadd.f32 %v1187, %v2339
  %v2706 = vadd.f32 %v1188, %v2340
  %v2707 = vadd.f32 %v1189, %v2341
  %v2708 = vadd.f32 %v1190, %v2342
  %v2709 = vadd.f32 %v1191, %v2343
  %v2710 = vadd.f32 %v1192, %v2344
  %v2711 = vadd.f32 %v1193, %v2345
  %v2712 = vadd.f32 %v1194, %v2346
  %v2713 = vadd.f32 %v1195, %v2347
  %v2714 = vadd.f32 %v1196, %v2348
  %v2715 = vadd.f32 %v1197, %v2349
  %v2716 = vadd.f32 %v1198, %v2350
  %v2717 = vadd.f32 %v1199, %v2351
  %v2718 = vadd.f32 %v1200, %v2352
  %v2719 = vadd.f32 %v1201, %v2353
  %v2720 = vadd.f32 %v1202, %v2354
  %v2721 = vadd.f32 %v1203, %v2355
  %v2722 = vadd.f32 %v1204, %v2356
  %v2723 = vadd.f32 %v1205, %v2357
  %v2724 = vadd.f32 %v1206, %v2358
  %v2725 = vadd.f32 %v1207, %v2359
  %v2726 = vadd.f32 %v1208, %v2360
  %v2727 = vadd.f32 %v1209, %v2361
  %v2728 = vadd.f32 %v1210, %v2362
  %v2729 = vadd.f32 %v1211, %v2363
  %v2730 = vadd.f32 %v1212, %v2364
  %v2731 = vadd.f32 %v1213, %v2365
  %v2732 = vadd.f32 %v1214, %v2366
  %v2733 = vadd.f32 %v1215, %v2367
  %v2734 = vadd.f32 %v1216, %v2368
  %v2735 = vadd.f32 %v1217, %v2369
  %v2736 = vadd.f32 %v1218, %v2370
  %v2737 = vadd.f32 %v1219, %v2371
  %v2738 = vadd.f32 %v1220, %v2372
  %v2739 = vadd.f32 %v1221, %v2373
  %v2740 = vadd.f32 %v1222, %v2374
  %v2741 = vadd.f32 %v1223, %v2375
  %v2742 = vadd.f32 %v1224, %v2376
  %v2743 = vadd.f32 %v1225, %v2377
  %v2744 = vadd.f32 %v1226, %v2378
  %v2745 = vadd.f32 %v1227, %v2379
  %v2746 = vadd.f32 %v1228, %v2380
  %v2747 = vadd.f32 %v1229, %v2381
  %v2748 = vadd.f32 %v1230, %v2382
  %v2749 = vadd.f32 %v1231, %v2383
  %v2750 = vadd.f32 %v1232, %v2384
  %v2751 = vadd.f32 %v1233, %v2385
  %v2752 = vadd.f32 %v1234, %v2386
  %v2753 = vadd.f32 %v1235, %v2387
  %v2754 = vadd.f32 %v1236, %v2388
  %v2755 = vadd.f32 %v1237, %v2389
  %v2756 = vadd.f32 %v1238, %v2390
  %v2757 = vadd.f32 %v1239, %v2391
  %v2758 = vadd.f32 %v1240, %v2392
  %v2759 = vadd.f32 %v1241, %v2393
  %v2760 = vadd.f32 %v1242, %v2394
  %v2761 = vadd.f32 %v1243, %v2395
  %v2762 = vadd.f32 %v1244, %v2396
  %v2763 = vadd.f32 %v1245, %v2397
  %v2764 = vadd.f32 %v1246, %v2398
  %v2765 = vadd.f32 %v1247, %v2399
  %v2766 = vadd.f32 %v1248, %v2400
  %v2767 = vadd.f32 %v1249, %v2401
  %v2768 = vadd.f32 %v1250, %v2402
  %v2769 = vadd.f32 %v1251, %v2403
  %v2770 = vadd.f32 %v1252, %v2404
  %v2771 = vadd.f32 %v1253, %v2405
  %v2772 = vadd.f32 %v1254, %v2406
  %v2773 = vadd.f32 %v1255, %v2407
  %v2774 = vadd.f32 %v1256, %v2408
  %v2775 = vadd.f32 %v1257, %v2409
  %v2776 = vadd.f32 %v1258, %v2410
  %v2777 = vadd.f32 %v1259, %v2411
  %v2778 = vadd.f32 %v1260, %v2412
  %v2779 = vadd.f32 %v1261, %v2413
  %v2780 = vadd.f32 %v1262, %v2414
  %v2781 = vadd.f32 %v1263, %v2415
  %v2782 = vadd.f32 %v1264, %v2416
  %v2783 = vadd.f32 %v1265, %v2417
  %v2784 = vadd.f32 %v1266, %v2418
  %v2785 = vadd.f32 %v1267, %v2419
  %v2786 = vadd.f32 %v1268, %v2420
  %v2787 = vadd.f32 %v1269, %v2421
  %v2788 = vadd.f32 %v1270, %v2422
  %v2789 = vadd.f32 %v1271, %v2423
  %v2790 = vadd.f32 %v1272, %v2424
  %v2791 = vadd.f32 %v1273, %v2425
  %v2792 = vadd.f32 %v1274, %v2426
  %v2793 = vadd.f32 %v1275, %v2427
  %v2794 = vadd.f32 %v1276, %v2428
  %v2795 = vadd.f32 %v1277, %v2429
  %v2796 = vadd.f32 %v1278, %v2430
  %v2797 = vadd.f32 %v1279, %v2431
  %v2798 = vadd.f32 %v1280, %v2432
  %v2799 = vadd.f32 %v1281, %v2433
  %v2800 = vadd.f32 %v1282, %v2434
  %v2801 = vadd.f32 %v1283, %v2435
  %v2802 = vadd.f32 %v1284, %v2436
  %v2803 = vadd.f32 %v1285, %v2437
  %v2804 = vadd.f32 %v1286, %v2438
  %v2805 = vadd.f32 %v1287, %v2439
  %v2806 = vadd.f32 %v1288, %v2440
  %v2807 = vadd.f32 %v1289, %v2441
  %v2808 = vadd.f32 %v1290, %v2442
  %v2809 = vadd.f32 %v1291, %v2443
  %v2810 = vadd.f32 %v1292, %v2444
  %v2811 = vadd.f32 %v1293, %v2445
  %v2812 = vadd.f32 %v1294, %v2446
  %v2813 = vadd.f32 %v1295, %v2447
  %v2814 = vadd.f32 %v1296, %v2448
  %v2815 = vadd.f32 %v1297, %v2449
  %v2816 = vadd.f32 %v1298, %v2450
  %v2817 = vadd.f32 %v1299, %v2451
  %v2818 = vadd.f32 %v1300, %v2452
  %v2819 = vadd.f32 %v1301, %v2453
  %v2820 = vadd.f32 %v1302, %v2454
  %v2821 = vadd.f32 %v1303, %v2455
  %v2822 = vadd.f32 %v1304, %v2456
  %v2823 = vadd.f32 %v1305, %v2457
  %v2824 = vadd.f32 %v1306, %v2458
  %v2825 = vadd.f32 %v1307, %v2459
  %v2826 = vadd.f32 %v1308, %v2460
  %v2827 = vadd.f32 %v1309, %v2461
  %v2828 = vadd.f32 %v1310, %v2462
  %v2829 = vadd.f32 %v1311, %v2463
  %v2830 = vadd.f32 %v1312, %v2464
  %v2831 = vadd.f32 %v1313, %v2465
  %v2832 = vadd.f32 %v1314, %v2466
  %v2833 = vadd.f32 %v1315, %v2467
  %v2834 = vadd.f32 %v1316, %v2468
  %v2835 = vadd.f32 %v1317, %v2469
  %v2836 = vadd.f32 %v1318, %v2470
  %v2837 = vadd.f32 %v1319, %v2471
  %v2838 = vadd.f32 %v1320, %v2472
  %v2839 = vadd.f32 %v1321, %v2473
  %v2840 = vadd.f32 %v1322, %v2474
  %v2841 = vadd.f32 %v1323, %v2475
  %v2842 = vadd.f32 %v1324, %v2476
  %v2843 = vadd.f32 %v1325, %v2477
  %v2844 = vadd.f32 %v1326, %v2478
  %v2845 = vadd.f32 %v1327, %v2479
  %v2846 = vadd.f32 %v1328, %v2480
  %v2847 = vadd.f32 %v1329, %v2481
  %v2848 = vadd.f32 %v1330, %v2482
  %v2849 = vadd.f32 %v1331, %v2483
  %v2850 = vadd.f32 %v1332, %v2484
  %v2851 = vadd.f32 %v1333, %v2485
  %v2852 = vadd.f32 %v1334, %v2486
  %v2853 = vadd.f32 %v1335, %v2487
  %v2854 = vadd.f32 %v1336, %v2488
  %v2855 = vadd.f32 %v1337, %v2489
  %v2856 = vadd.f32 %v1338, %v2490
  %v2857 = vadd.f32 %v1339, %v2491
  %v2858 = vadd.f32 %v1340, %v2492
  %v2859 = vadd.f32 %v1341, %v2493
  %v2860 = vadd.f32 %v1342, %v2494
  %v2861 = vadd.f32 %v1343, %v2495
  %v2862 = vadd.f32 %v1344, %v2496
  %v2863 = vadd.f32 %v1345, %v2497
  %v2864 = vadd.f32 %v1346, %v2498
  %v2865 = vadd.f32 %v1347, %v2499
  %v2866 = vadd.f32 %v1348, %v2500
  %v2867 = vadd.f32 %v1349, %v2501
  %v2868 = vadd.f32 %v1350, %v2502
  %v2869 = vadd.f32 %v1351, %v2503
  %v2870 = vadd.f32 %v1352, %v2504
  %v2871 = vadd.f32 %v1353, %v2505
  %v2872 = vadd.f32 %v1354, %v2506
  %v2873 = vadd.f32 %v1355, %v2507
  %v2874 = vadd.f32 %v1356, %v2508
  %v2875 = vadd.f32 %v1357, %v2509
  %v2876 = vadd.f32 %v1358, %v2510
  %v2877 = vadd.f32 %v1359, %v2511
  %v2878 = vadd.f32 %v1360, %v2512
  %v2879 = vadd.f32 %v1361, %v2513
  %v2880 = vadd.f32 %v1362, %v2514
  %v2881 = vadd.f32 %v1363, %v2515
  %v2882 = vadd.f32 %v1364, %v2516
  %v2883 = vadd.f32 %v1365, %v2517
  %v2884 = vadd.f32 %v1366, %v2518
  %v2885 = vadd.f32 %v1367, %v2519
  %v2886 = vadd.f32 %v1368, %v2520
  %v2887 = vadd.f32 %v1369, %v2521
  %v2888 = vadd.f32 %v1370, %v2522
  %v2889 = vadd.f32 %v1371, %v2523
  %v2890 = vadd.f32 %v1372, %v2524
  %v2891 = vadd.f32 %v1373, %v2525
  %v2892 = vadd.f32 %v1374, %v2526
  %v2893 = vadd.f32 %v1375, %v2527
  %v2894 = vadd.f32 %v1376, %v2528
  %v2895 = vadd.f32 %v1377, %v2529
  %v2896 = vadd.f32 %v1378, %v2530
  %v2897 = vadd.f32 %v1379, %v2531
  %v2898 = vadd.f32 %v1380, %v2532
  %v2899 = vadd.f32 %v1381, %v2533
  %v2900 = vadd.f32 %v1382, %v2534
  %v2901 = vadd.f32 %v1383, %v2535
  %v2902 = vadd.f32 %v1384, %v2536
  %v2903 = vadd.f32 %v1385, %v2537
  %v2904 = vadd.f32 %v1386, %v2538
  %v2905 = vadd.f32 %v1387, %v2539
  %v2906 = vadd.f32 %v1388, %v2540
  %v2907 = vadd.f32 %v1389, %v2541
  %v2908 = vadd.f32 %v1390, %v2542
  %v2909 = vadd.f32 %v1391, %v2543
  %v2910 = vadd.f32 %v1392, %v2544
  %v2911 = vadd.f32 %v1393, %v2545
  %v2912 = vadd.f32 %v1394, %v2546
  %v2913 = vadd.f32 %v1395, %v2547
  %v2914 = vadd.f32 %v1396, %v2548
  %v2915 = vadd.f32 %v1397, %v2549
  %v2916 = vadd.f32 %v1398, %v2550
  %v2917 = vadd.f32 %v1399, %v2551
  %v2918 = vadd.f32 %v1400, %v2552
  %v2919 = vadd.f32 %v1401, %v2553
  %v2920 = vadd.f32 %v1402, %v2554
  %v2921 = vadd.f32 %v1403, %v2555
  %v2922 = vadd.f32 %v1404, %v2556
  %v2923 = vadd.f32 %v1405, %v2557
  %v2924 = vadd.f32 %v1406, %v2558
  %v2925 = vadd.f32 %v1407, %v2559
  %v2926 = vadd.f32 %v1408, %v2560
  %v2927 = vadd.f32 %v1409, %v2561
  %v2928 = vadd.f32 %v1410, %v2562
  %v2929 = vadd.f32 %v1411, %v2563
  %v2930 = vadd.f32 %v1412, %v2564
  %v2931 = vadd.f32 %v1413, %v2565
  %v2932 = vadd.f32 %v1414, %v2566
  %v2933 = vadd.f32 %v1415, %v2567
  %v2934 = vadd.f32 %v1416, %v2568
  %v2935 = vadd.f32 %v1417, %v2569
  %v2936 = vadd.f32 %v1418, %v2570
  %v2937 = vadd.f32 %v1419, %v2571
  %v2938 = vadd.f32 %v1420, %v2572
  %v2939 = vadd.f32 %v1421, %v2573
  %v2940 = vadd.f32 %v1422, %v2574
  %v2941 = vadd.f32 %v1423, %v2575
  %v2942 = vadd.f32 %v1424, %v2576
  %v2943 = vadd.f32 %v1425, %v2577
  %v2944 = vadd.f32 %v1426, %v2578
  %v2945 = vadd.f32 %v1427, %v2579
  %v2946 = vadd.f32 %v1428, %v2580
  %v2947 = vadd.f32 %v1429, %v2581
  %v2948 = vadd.f32 %v1430, %v2582
  %v2949 = vadd.f32 %v1431, %v2583
  %v2950 = vadd.f32 %v1432, %v2584
  %v2951 = vadd.f32 %v1433, %v2585
  %v2952 = vadd.f32 %v1434, %v2586
  %v2953 = vadd.f32 %v1435, %v2587
  %v2954 = vadd.f32 %v1436, %v2588
  %v2955 = vadd.f32 %v1437, %v2589
  %v2956 = vadd.f32 %v1438, %v2590
  %v2957 = vadd.f32 %v1439, %v2591
  %v2958 = vadd.f32 %v1440, %v2592
  %v2959 = vadd.f32 %v1441, %v2593
  %v2960 = vadd.f32 %v1442, %v2594
  %v2961 = vadd.f32 %v1443, %v2595
  %v2962 = vadd.f32 %v1444, %v2596
  %v2963 = vadd.f32 %v1445, %v2597
  %v2964 = vadd.f32 %v1446, %v2598
  %v2965 = vadd.f32 %v1447, %v2599
  %v2966 = vadd.f32 %v1448, %v2600
  %v2967 = vadd.f32 %v1449, %v2601
  %v2968 = vadd.f32 %v1450, %v2602
  %v2969 = vadd.f32 %v1451, %v2603
  %v2970 = vadd.f32 %v1452, %v2604
  %v2971 = vadd.f32 %v1453, %v2605
  %v2972 = vadd.f32 %v1454, %v2606
  %v2973 = vadd.f32 %v1455, %v2607
  %v2974 = vadd.f32 %v1456, %v2608
  %v2975 = vadd.f32 %v1457, %v2609
  %v2976 = vadd.f32 %v1458, %v2610
  %v2977 = vadd.f32 %v1459, %v2611
  %v2978 = vadd.f32 %v1460, %v2612
  %v2979 = vadd.f32 %v1461, %v2613
  %v2980 = vadd.f32 %v1462, %v2614
  %v2981 = vadd.f32 %v1463, %v2615
  %v2982 = vadd.f32 %v1464, %v2616
  %v2983 = vadd.f32 %v1465, %v2617
  %v2984 = vadd.f32 %v1466, %v2618
  %v2985 = vadd.f32 %v1467, %v2619
  %v2986 = vadd.f32 %v1468, %v2620
  %v2987 = vadd.f32 %v1469, %v2621
  %v2988 = vadd.f32 %v1470, %v2622
  %v2989 = vadd.f32 %v1471, %v2623
  %v2990 = vadd.f32 %v1472, %v2624
  %v2991 = vadd.f32 %v1473, %v2625
  %v2992 = vadd.f32 %v1474, %v2626
  %v2993 = vadd.f32 %v1475, %v2627
  %v2994 = vadd.f32 %v1476, %v2628
  %v2995 = vadd.f32 %v1477, %v2629
  %v2996 = vadd.f32 %v1478, %v2630
  %v2997 = vadd.f32 %v1479, %v2631
  %v2998 = vadd.f32 %v1480, %v2632
  %v2999 = vadd.f32 %v1481, %v2633
  %v3000 = vadd.f32 %v1482, %v2634
  %v3001 = vadd.f32 %v1483, %v2635
  %v3002 = vadd.f32 %v1484, %v2636
  %v3003 = vadd.f32 %v1485, %v2637
  %v3004 = vadd.f32 %v1486, %v2638
  %v3005 = vadd.f32 %v1487, %v2639
  %v3006 = vadd.f32 %v1488, %v2640
  %v3007 = vadd.f32 %v1489, %v2641
  %v3008 = vadd.f32 %v1490, %v2642
  %v3009 = vadd.f32 %v1491, %v2643
  %v3010 = vadd.f32 %v1492, %v2644
  %v3011 = vadd.f32 %v1493, %v2645
  %v3012 = vadd.f32 %v1494, %v2646
  %v3013 = vadd.f32 %v1495, %v2647
  %v3014 = vadd.f32 %v1496, %v2648
  %v3015 = vadd.f32 %v1497, %v2649
  %v3016 = vadd.f32 %v1498, %v2650
  %v3017 = vadd.f32 %v1499, %v2651
  %v3018 = vadd.f32 %v1500, %v2652
  %v3019 = vadd.f32 %v1501, %v2653
  %v3020 = vadd.f32 %v1502, %v2654
  %v3021 = vadd.f32 %v1503, %v2655
  %v3022 = vadd.f32 %v1504, %v2656
  %v3023 = vadd.f32 %v1505, %v2657
  %v3024 = vadd.f32 %v1506, %v2658
  %v3025 = vadd.f32 %v1507, %v2659
  %v3026 = vadd.f32 %v1508, %v2660
  %v3027 = vadd.f32 %v1509, %v2661
  %v3028 = vadd.f32 %v1510, %v2662
  %v3029 = vadd.f32 %v1511, %v2663
  %v3030 = vadd.f32 %v1512, %v2664
  %v3031 = vadd.f32 %v1513, %v2665
  %v3032 = vadd.f32 %v1514, %v2666
  %v3033 = vadd.f32 %v1515, %v2667
  %v3034 = vadd.f32 %v1516, %v2668
  %v3035 = vadd.f32 %v1517, %v2669
  %v3036 = vadd.f32 %v1518, %v2670
  %v3037 = vadd.f32 %v1519, %v2671
  %v3038 = vadd.f32 %v1520, %v2672
  %v3039 = vadd.f32 %v1521, %v2673
  %v3040 = vadd.f32 %v1522, %v2674
  %v3041 = vadd.f32 %v1523, %v2675
  %v3042 = vadd.f32 %v1524, %v2676
  %v3043 = vadd.f32 %v1525, %v2677
  %v3044 = vadd.f32 %v1526, %v2678
  %v3045 = vadd.f32 %v1527, %v2679
  %v3046 = vadd.f32 %v1528, %v2680
  %v3047 = vadd.f32 %v1529, %v2681
  %v3048 = vadd.f32 %v1530, %v2682
  %v3049 = vadd.f32 %v1531, %v2683
  %v3050 = vadd.f32 %v1532, %v2684
  %v3051 = vadd.f32 %v1533, %v2685
  %v3052 = vadd.f32 %v1534, %v2686
  %3053 = vst [vmem:[%s2] sm:$0xff] %v2687
  %3054 = vst [vmem:[%s2 + $0x8] sm:$0xff] %v2688
  %3055 = vst [vmem:[%s2 + $0x10] sm:$0xff] %v2689
  %3056 = vst [vmem:[%s2 + $0x18] sm:$0xff] %v2690
  %3057 = vst [vmem:[%s2 + $0x20] sm:$0xff] %v2691
  %3058 = vst [vmem:[%s2 + $0x28] sm:$0xff] %v2692
  %3059 = vst [vmem:[%s2 + $0x30] sm:$0xff] %v2693
  %3060 = vst [vmem:[%s2 + $0x38] sm:$0xff] %v2694
  %3061 = vst [vmem:[%s2 + $0x40] sm:$0xff] %v2695
  %3062 = vst [vmem:[%s2 + $0x48] sm:$0xff] %v2696
  %3063 = vst [vmem:[%s2 + $0x50] sm:$0xff] %v2697
  %3064 = vst [vmem:[%s2 + $0x58] sm:$0xff] %v2698
  %3065 = vst [vmem:[%s2 + $0x60] sm:$0xff] %v2699
  %3066 = vst [vmem:[%s2 + $0x68] sm:$0xff] %v2700
  %3067 = vst [vmem:[%s2 + $0x70] sm:$0xff] %v2701
  %3068 = vst [vmem:[%s2 + $0x78] sm:$0xff] %v2702
  %3069 = vst [vmem:[%s2 + $0x80] sm:$0xff] %v2703
  %3070 = vst [vmem:[%s2 + $0x88] sm:$0xff] %v2704
  %3071 = vst [vmem:[%s2 + $0x90] sm:$0xff] %v2705
  %3072 = vst [vmem:[%s2 + $0x98] sm:$0xff] %v2706
  %3073 = vst [vmem:[%s2 + $0xa0] sm:$0xff] %v2707
  %3074 = vst [vmem:[%s2 + $0xa8] sm:$0xff] %v2708
  %3075 = vst [vmem:[%s2 + $0xb0] sm:$0xff] %v2709
  %3076 = vst [vmem:[%s2 + $0xb8] sm:$0xff] %v2710
  %3077 = vst [vmem:[%s2 + $0xc0] sm:$0xff] %v2711
  %3078 = vst [vmem:[%s2 + $0xc8] sm:$0xff] %v2712
  %3079 = vst [vmem:[%s2 + $0xd0] sm:$0xff] %v2713
  %3080 = vst [vmem:[%s2 + $0xd8] sm:$0xff] %v2714
  %3081 = vst [vmem:[%s2 + $0xe0] sm:$0xff] %v2715
  %3082 = vst [vmem:[%s2 + $0xe8] sm:$0xff] %v2716
  %3083 = vst [vmem:[%s2 + $0xf0] sm:$0xff] %v2717
  %3084 = vst [vmem:[%s2 + $0xf8] sm:$0xff] %v2718
  %3085 = vst [vmem:[%s2 + $0x100] sm:$0xff] %v2719
  %3086 = vst [vmem:[%s2 + $0x108] sm:$0xff] %v2720
  %3087 = vst [vmem:[%s2 + $0x110] sm:$0xff] %v2721
  %3088 = vst [vmem:[%s2 + $0x118] sm:$0xff] %v2722
  %3089 = vst [vmem:[%s2 + $0x120] sm:$0xff] %v2723
  %3090 = vst [vmem:[%s2 + $0x128] sm:$0xff] %v2724
  %3091 = vst [vmem:[%s2 + $0x130] sm:$0xff] %v2725
  %3092 = vst [vmem:[%s2 + $0x138] sm:$0xff] %v2726
  %3093 = vst [vmem:[%s2 + $0x140] sm:$0xff] %v2727
  %3094 = vst [vmem:[%s2 + $0x148] sm:$0xff] %v2728
  %3095 = vst [vmem:[%s2 + $0x150] sm:$0xff] %v2729
  %3096 = vst [vmem:[%s2 + $0x158] sm:$0xff] %v2730
  %3097 = vst [vmem:[%s2 + $0x160] sm:$0xff] %v2731
  %3098 = vst [vmem:[%s2 + $0x168] sm:$0xff] %v2732
  %3099 = vst [vmem:[%s2 + $0x170] sm:$0xff] %v2733
  %3100 = vst [vmem:[%s2 + $0x178] sm:$0xff] %v2734
  %3101 = vst [vmem:[%s2 + $0x180] sm:$0xff] %v2735
  %3102 = vst [vmem:[%s2 + $0x188] sm:$0xff] %v2736
  %3103 = vst [vmem:[%s2 + $0x190] sm:$0xff] %v2737
  %3104 = vst [vmem:[%s2 + $0x198] sm:$0xff] %v2738
  %3105 = vst [vmem:[%s2 + $0x1a0] sm:$0xff] %v2739
  %3106 = vst [vmem:[%s2 + $0x1a8] sm:$0xff] %v2740
  %3107 = vst [vmem:[%s2 + $0x1b0] sm:$0xff] %v2741
  %3108 = vst [vmem:[%s2 + $0x1b8] sm:$0xff] %v2742
  %3109 = vst [vmem:[%s2 + $0x1c0] sm:$0xff] %v2743
  %3110 = vst [vmem:[%s2 + $0x1c8] sm:$0xff] %v2744
  %3111 = vst [vmem:[%s2 + $0x1d0] sm:$0xff] %v2745
  %3112 = vst [vmem:[%s2 + $0x1d8] sm:$0xff] %v2746
  %3113 = vst [vmem:[%s2 + $0x1e0] sm:$0xff] %v2747
  %3114 = vst [vmem:[%s2 + $0x1e8] sm:$0xff] %v2748
  %3115 = vst [vmem:[%s2 + $0x1f0] sm:$0xff] %v2749
  %3116 = vst [vmem:[%s2 + $0x1f8] sm:$0xff] %v2750
  %3117 = vst [vmem:[%s2 + $0x200] sm:$0xff] %v2751
  %3118 = vst [vmem:[%s2 + $0x208] sm:$0xff] %v2752
  %3119 = vst [vmem:[%s2 + $0x210] sm:$0xff] %v2753
  %3120 = vst [vmem:[%s2 + $0x218] sm:$0xff] %v2754
  %3121 = vst [vmem:[%s2 + $0x220] sm:$0xff] %v2755
  %3122 = vst [vmem:[%s2 + $0x228] sm:$0xff] %v2756
  %3123 = vst [vmem:[%s2 + $0x230] sm:$0xff] %v2757
  %3124 = vst [vmem:[%s2 + $0x238] sm:$0xff] %v2758
  %3125 = vst [vmem:[%s2 + $0x240] sm:$0xff] %v2759
  %3126 = vst [vmem:[%s2 + $0x248] sm:$0xff] %v2760
  %3127 = vst [vmem:[%s2 + $0x250] sm:$0xff] %v2761
  %3128 = vst [vmem:[%s2 + $0x258] sm:$0xff] %v2762
  %3129 = vst [vmem:[%s2 + $0x260] sm:$0xff] %v2763
  %3130 = vst [vmem:[%s2 + $0x268] sm:$0xff] %v2764
  %3131 = vst [vmem:[%s2 + $0x270] sm:$0xff] %v2765
  %3132 = vst [vmem:[%s2 + $0x278] sm:$0xff] %v2766
  %3133 = vst [vmem:[%s2 + $0x280] sm:$0xff] %v2767
  %3134 = vst [vmem:[%s2 + $0x288] sm:$0xff] %v2768
  %3135 = vst [vmem:[%s2 + $0x290] sm:$0xff] %v2769
  %3136 = vst [vmem:[%s2 + $0x298] sm:$0xff] %v2770
  %3137 = vst [vmem:[%s2 + $0x2a0] sm:$0xff] %v2771
  %3138 = vst [vmem:[%s2 + $0x2a8] sm:$0xff] %v2772
  %3139 = vst [vmem:[%s2 + $0x2b0] sm:$0xff] %v2773
  %3140 = vst [vmem:[%s2 + $0x2b8] sm:$0xff] %v2774
  %3141 = vst [vmem:[%s2 + $0x2c0] sm:$0xff] %v2775
  %3142 = vst [vmem:[%s2 + $0x2c8] sm:$0xff] %v2776
  %3143 = vst [vmem:[%s2 + $0x2d0] sm:$0xff] %v2777
  %3144 = vst [vmem:[%s2 + $0x2d8] sm:$0xff] %v2778
  %3145 = vst [vmem:[%s2 + $0x2e0] sm:$0xff] %v2779
  %3146 = vst [vmem:[%s2 + $0x2e8] sm:$0xff] %v2780
  %3147 = vst [vmem:[%s2 + $0x2f0] sm:$0xff] %v2781
  %3148 = vst [vmem:[%s2 + $0x2f8] sm:$0xff] %v2782
  %3149 = vst [vmem:[%s2 + $0x300] sm:$0xff] %v2783
  %3150 = vst [vmem:[%s2 + $0x308] sm:$0xff] %v2784
  %3151 = vst [vmem:[%s2 + $0x310] sm:$0xff] %v2785
  %3152 = vst [vmem:[%s2 + $0x318] sm:$0xff] %v2786
  %3153 = vst [vmem:[%s2 + $0x320] sm:$0xff] %v2787
  %3154 = vst [vmem:[%s2 + $0x328] sm:$0xff] %v2788
  %3155 = vst [vmem:[%s2 + $0x330] sm:$0xff] %v2789
  %3156 = vst [vmem:[%s2 + $0x338] sm:$0xff] %v2790
  %3157 = vst [vmem:[%s2 + $0x340] sm:$0xff] %v2791
  %3158 = vst [vmem:[%s2 + $0x348] sm:$0xff] %v2792
  %3159 = vst [vmem:[%s2 + $0x350] sm:$0xff] %v2793
  %3160 = vst [vmem:[%s2 + $0x358] sm:$0xff] %v2794
  %3161 = vst [vmem:[%s2 + $0x360] sm:$0xff] %v2795
  %3162 = vst [vmem:[%s2 + $0x368] sm:$0xff] %v2796
  %3163 = vst [vmem:[%s2 + $0x370] sm:$0xff] %v2797
  %3164 = vst [vmem:[%s2 + $0x378] sm:$0xff] %v2798
  %3165 = vst [vmem:[%s2 + $0x380] sm:$0xff] %v2799
  %3166 = vst [vmem:[%s2 + $0x388] sm:$0xff] %v2800
  %3167 = vst [vmem:[%s2 + $0x390] sm:$0xff] %v2801
  %3168 = vst [vmem:[%s2 + $0x398] sm:$0xff] %v2802
  %3169 = vst [vmem:[%s2 + $0x3a0] sm:$0xff] %v2803
  %3170 = vst [vmem:[%s2 + $0x3a8] sm:$0xff] %v2804
  %3171 = vst [vmem:[%s2 + $0x3b0] sm:$0xff] %v2805
  %3172 = vst [vmem:[%s2 + $0x3b8] sm:$0xff] %v2806
  %3173 = vst [vmem:[%s2 + $0x3c0] sm:$0xf] %v2807
  %3174 = vst [vmem:[%s2 + $0x3c8] sm:$0xf] %v2808
  %3175 = vst [vmem:[%s2 + $0x3d0] sm:$0xff] %v2809
  %3176 = vst [vmem:[%s2 + $0x3d8] sm:$0xff] %v2810
  %3177 = vst [vmem:[%s2 + $0x3e0] sm:$0xff] %v2811
  %3178 = vst [vmem:[%s2 + $0x3e8] sm:$0xff] %v2812
  %3179 = vst [vmem:[%s2 + $0x3f0] sm:$0xff] %v2813
  %3180 = vst [vmem:[%s2 + $0x3f8] sm:$0xff] %v2814
  %3181 = vst [vmem:[%s2 + $0x400] sm:$0xff] %v2815
  %3182 = vst [vmem:[%s2 + $0x408] sm:$0xff] %v2816
  %3183 = vst [vmem:[%s2 + $0x410] sm:$0xff] %v2817
  %3184 = vst [vmem:[%s2 + $0x418] sm:$0xff] %v2818
  %3185 = vst [vmem:[%s2 + $0x420] sm:$0xff] %v2819
  %3186 = vst [vmem:[%s2 + $0x428] sm:$0xff] %v2820
  %3187 = vst [vmem:[%s2 + $0x430] sm:$0xff] %v2821
  %3188 = vst [vmem:[%s2 + $0x438] sm:$0xff] %v2822
  %3189 = vst [vmem:[%s2 + $0x440] sm:$0xff] %v2823
  %3190 = vst [vmem:[%s2 + $0x448] sm:$0xff] %v2824
  %3191 = vst [vmem:[%s2 + $0x450] sm:$0xff] %v2825
  %3192 = vst [vmem:[%s2 + $0x458] sm:$0xff] %v2826
  %3193 = vst [vmem:[%s2 + $0x460] sm:$0xff] %v2827
  %3194 = vst [vmem:[%s2 + $0x468] sm:$0xff] %v2828
  %3195 = vst [vmem:[%s2 + $0x470] sm:$0xff] %v2829
  %3196 = vst [vmem:[%s2 + $0x478] sm:$0xff] %v2830
  %3197 = vst [vmem:[%s2 + $0x480] sm:$0xff] %v2831
  %3198 = vst [vmem:[%s2 + $0x488] sm:$0xff] %v2832
  %3199 = vst [vmem:[%s2 + $0x490] sm:$0xff] %v2833
  %3200 = vst [vmem:[%s2 + $0x498] sm:$0xff] %v2834
  %3201 = vst [vmem:[%s2 + $0x4a0] sm:$0xff] %v2835
  %3202 = vst [vmem:[%s2 + $0x4a8] sm:$0xff] %v2836
  %3203 = vst [vmem:[%s2 + $0x4b0] sm:$0xff] %v2837
  %3204 = vst [vmem:[%s2 + $0x4b8] sm:$0xff] %v2838
  %3205 = vst [vmem:[%s2 + $0x4c0] sm:$0xff] %v2839
  %3206 = vst [vmem:[%s2 + $0x4c8] sm:$0xff] %v2840
  %3207 = vst [vmem:[%s2 + $0x4d0] sm:$0xff] %v2841
  %3208 = vst [vmem:[%s2 + $0x4d8] sm:$0xff] %v2842
  %3209 = vst [vmem:[%s2 + $0x4e0] sm:$0xff] %v2843
  %3210 = vst [vmem:[%s2 + $0x4e8] sm:$0xff] %v2844
  %3211 = vst [vmem:[%s2 + $0x4f0] sm:$0xff] %v2845
  %3212 = vst [vmem:[%s2 + $0x4f8] sm:$0xff] %v2846
  %3213 = vst [vmem:[%s2 + $0x500] sm:$0xff] %v2847
  %3214 = vst [vmem:[%s2 + $0x508] sm:$0xff] %v2848
  %3215 = vst [vmem:[%s2 + $0x510] sm:$0xff] %v2849
  %3216 = vst [vmem:[%s2 + $0x518] sm:$0xff] %v2850
  %3217 = vst [vmem:[%s2 + $0x520] sm:$0xff] %v2851
  %3218 = vst [vmem:[%s2 + $0x528] sm:$0xff] %v2852
  %3219 = vst [vmem:[%s2 + $0x530] sm:$0xff] %v2853
  %3220 = vst [vmem:[%s2 + $0x538] sm:$0xff] %v2854
  %3221 = vst [vmem:[%s2 + $0x540] sm:$0xff] %v2855
  %3222 = vst [vmem:[%s2 + $0x548] sm:$0xff] %v2856
  %3223 = vst [vmem:[%s2 + $0x550] sm:$0xff] %v2857
  %3224 = vst [vmem:[%s2 + $0x558] sm:$0xff] %v2858
  %3225 = vst [vmem:[%s2 + $0x560] sm:$0xff] %v2859
  %3226 = vst [vmem:[%s2 + $0x568] sm:$0xff] %v2860
  %3227 = vst [vmem:[%s2 + $0x570] sm:$0xff] %v2861
  %3228 = vst [vmem:[%s2 + $0x578] sm:$0xff] %v2862
  %3229 = vst [vmem:[%s2 + $0x580] sm:$0xff] %v2863
  %3230 = vst [vmem:[%s2 + $0x588] sm:$0xff] %v2864
  %3231 = vst [vmem:[%s2 + $0x590] sm:$0xff] %v2865
  %3232 = vst [vmem:[%s2 + $0x598] sm:$0xff] %v2866
  %3233 = vst [vmem:[%s2 + $0x5a0] sm:$0xff] %v2867
  %3234 = vst [vmem:[%s2 + $0x5a8] sm:$0xff] %v2868
  %3235 = vst [vmem:[%s2 + $0x5b0] sm:$0xff] %v2869
  %3236 = vst [vmem:[%s2 + $0x5b8] sm:$0xff] %v2870
  %3237 = vst [vmem:[%s2 + $0x5c0] sm:$0xff] %v2871
  %3238 = vst [vmem:[%s2 + $0x5c8] sm:$0xff] %v2872
  %3239 = vst [vmem:[%s2 + $0x5d0] sm:$0xff] %v2873
  %3240 = vst [vmem:[%s2 + $0x5d8] sm:$0xff] %v2874
  %3241 = vst [vmem:[%s2 + $0x5e0] sm:$0xff] %v2875
  %3242 = vst [vmem:[%s2 + $0x5e8] sm:$0xff] %v2876
  %3243 = vst [vmem:[%s2 + $0x5f0] sm:$0xff] %v2877
  %3244 = vst [vmem:[%s2 + $0x5f8] sm:$0xff] %v2878
  %3245 = vst [vmem:[%s2 + $0x600] sm:$0xff] %v2879
  %3246 = vst [vmem:[%s2 + $0x608] sm:$0xff] %v2880
  %3247 = vst [vmem:[%s2 + $0x610] sm:$0xff] %v2881
  %3248 = vst [vmem:[%s2 + $0x618] sm:$0xff] %v2882
  %3249 = vst [vmem:[%s2 + $0x620] sm:$0xff] %v2883
  %3250 = vst [vmem:[%s2 + $0x628] sm:$0xff] %v2884
  %3251 = vst [vmem:[%s2 + $0x630] sm:$0xff] %v2885
  %3252 = vst [vmem:[%s2 + $0x638] sm:$0xff] %v2886
  %3253 = vst [vmem:[%s2 + $0x640] sm:$0xff] %v2887
  %3254 = vst [vmem:[%s2 + $0x648] sm:$0xff] %v2888
  %3255 = vst [vmem:[%s2 + $0x650] sm:$0xff] %v2889
  %3256 = vst [vmem:[%s2 + $0x658] sm:$0xff] %v2890
  %3257 = vst [vmem:[%s2 + $0x660] sm:$0xff] %v2891
  %3258 = vst [vmem:[%s2 + $0x668] sm:$0xff] %v2892
  %3259 = vst [vmem:[%s2 + $0x670] sm:$0xff] %v2893
  %3260 = vst [vmem:[%s2 + $0x678] sm:$0xff] %v2894
  %3261 = vst [vmem:[%s2 + $0x680] sm:$0xff] %v2895
  %3262 = vst [vmem:[%s2 + $0x688] sm:$0xff] %v2896
  %3263 = vst [vmem:[%s2 + $0x690] sm:$0xff] %v2897
  %3264 = vst [vmem:[%s2 + $0x698] sm:$0xff] %v2898
  %3265 = vst [vmem:[%s2 + $0x6a0] sm:$0xff] %v2899
  %3266 = vst [vmem:[%s2 + $0x6a8] sm:$0xff] %v2900
  %3267 = vst [vmem:[%s2 + $0x6b0] sm:$0xff] %v2901
  %3268 = vst [vmem:[%s2 + $0x6b8] sm:$0xff] %v2902
  %3269 = vst [vmem:[%s2 + $0x6c0] sm:$0xff] %v2903
  %3270 = vst [vmem:[%s2 + $0x6c8] sm:$0xff] %v2904
  %3271 = vst [vmem:[%s2 + $0x6d0] sm:$0xff] %v2905
  %3272 = vst [vmem:[%s2 + $0x6d8] sm:$0xff] %v2906
  %3273 = vst [vmem:[%s2 + $0x6e0] sm:$0xff] %v2907
  %3274 = vst [vmem:[%s2 + $0x6e8] sm:$0xff] %v2908
  %3275 = vst [vmem:[%s2 + $0x6f0] sm:$0xff] %v2909
  %3276 = vst [vmem:[%s2 + $0x6f8] sm:$0xff] %v2910
  %3277 = vst [vmem:[%s2 + $0x700] sm:$0xff] %v2911
  %3278 = vst [vmem:[%s2 + $0x708] sm:$0xff] %v2912
  %3279 = vst [vmem:[%s2 + $0x710] sm:$0xff] %v2913
  %3280 = vst [vmem:[%s2 + $0x718] sm:$0xff] %v2914
  %3281 = vst [vmem:[%s2 + $0x720] sm:$0xff] %v2915
  %3282 = vst [vmem:[%s2 + $0x728] sm:$0xff] %v2916
  %3283 = vst [vmem:[%s2 + $0x730] sm:$0xff] %v2917
  %3284 = vst [vmem:[%s2 + $0x738] sm:$0xff] %v2918
  %3285 = vst [vmem:[%s2 + $0x740] sm:$0xff] %v2919
  %3286 = vst [vmem:[%s2 + $0x748] sm:$0xff] %v2920
  %3287 = vst [vmem:[%s2 + $0x750] sm:$0xff] %v2921
  %3288 = vst [vmem:[%s2 + $0x758] sm:$0xff] %v2922
  %3289 = vst [vmem:[%s2 + $0x760] sm:$0xff] %v2923
  %3290 = vst [vmem:[%s2 + $0x768] sm:$0xff] %v2924
  %3291 = vst [vmem:[%s2 + $0x770] sm:$0xff] %v2925
  %3292 = vst [vmem:[%s2 + $0x778] sm:$0xff] %v2926
  %3293 = vst [vmem:[%s2 + $0x780] sm:$0xff] %v2927
  %3294 = vst [vmem:[%s2 + $0x788] sm:$0xff] %v2928
  %3295 = vst [vmem:[%s2 + $0x790] sm:$0xf] %v2929
  %3296 = vst [vmem:[%s2 + $0x798] sm:$0xf] %v2930
  %3297 = vst [vmem:[%s2 + $0x7a0] sm:$0xff] %v2931
  %3298 = vst [vmem:[%s2 + $0x7a8] sm:$0xff] %v2932
  %3299 = vst [vmem:[%s2 + $0x7b0] sm:$0xff] %v2933
  %3300 = vst [vmem:[%s2 + $0x7b8] sm:$0xff] %v2934
  %3301 = vst [vmem:[%s2 + $0x7c0] sm:$0xff] %v2935
  %3302 = vst [vmem:[%s2 + $0x7c8] sm:$0xff] %v2936
  %3303 = vst [vmem:[%s2 + $0x7d0] sm:$0xff] %v2937
  %3304 = vst [vmem:[%s2 + $0x7d8] sm:$0xff] %v2938
  %3305 = vst [vmem:[%s2 + $0x7e0] sm:$0xff] %v2939
  %3306 = vst [vmem:[%s2 + $0x7e8] sm:$0xff] %v2940
  %3307 = vst [vmem:[%s2 + $0x7f0] sm:$0xff] %v2941
  %3308 = vst [vmem:[%s2 + $0x7f8] sm:$0xff] %v2942
  %3309 = vst [vmem:[%s2 + $0x800] sm:$0xff] %v2943
  %3310 = vst [vmem:[%s2 + $0x808] sm:$0xff] %v2944
  %3311 = vst [vmem:[%s2 + $0x810] sm:$0xff] %v2945
  %3312 = vst [vmem:[%s2 + $0x818] sm:$0xff] %v2946
  %3313 = vst [vmem:[%s2 + $0x820] sm:$0xff] %v2947
  %3314 = vst [vmem:[%s2 + $0x828] sm:$0xff] %v2948
  %3315 = vst [vmem:[%s2 + $0x830] sm:$0xff] %v2949
  %3316 = vst [vmem:[%s2 + $0x838] sm:$0xff] %v2950
  %3317 = vst [vmem:[%s2 + $0x840] sm:$0xff] %v2951
  %3318 = vst [vmem:[%s2 + $0x848] sm:$0xff] %v2952
  %3319 = vst [vmem:[%s2 + $0x850] sm:$0xff] %v2953
  %3320 = vst [vmem:[%s2 + $0x858] sm:$0xff] %v2954
  %3321 = vst [vmem:[%s2 + $0x860] sm:$0xff] %v2955
  %3322 = vst [vmem:[%s2 + $0x868] sm:$0xff] %v2956
  %3323 = vst [vmem:[%s2 + $0x870] sm:$0xff] %v2957
  %3324 = vst [vmem:[%s2 + $0x878] sm:$0xff] %v2958
  %3325 = vst [vmem:[%s2 + $0x880] sm:$0xff] %v2959
  %3326 = vst [vmem:[%s2 + $0x888] sm:$0xff] %v2960
  %3327 = vst [vmem:[%s2 + $0x890] sm:$0xff] %v2961
  %3328 = vst [vmem:[%s2 + $0x898] sm:$0xff] %v2962
  %3329 = vst [vmem:[%s2 + $0x8a0] sm:$0xff] %v2963
  %3330 = vst [vmem:[%s2 + $0x8a8] sm:$0xff] %v2964
  %3331 = vst [vmem:[%s2 + $0x8b0] sm:$0xff] %v2965
  %3332 = vst [vmem:[%s2 + $0x8b8] sm:$0xff] %v2966
  %3333 = vst [vmem:[%s2 + $0x8c0] sm:$0xff] %v2967
  %3334 = vst [vmem:[%s2 + $0x8c8] sm:$0xff] %v2968
  %3335 = vst [vmem:[%s2 + $0x8d0] sm:$0xff] %v2969
  %3336 = vst [vmem:[%s2 + $0x8d8] sm:$0xff] %v2970
  %3337 = vst [vmem:[%s2 + $0x8e0] sm:$0xff] %v2971
  %3338 = vst [vmem:[%s2 + $0x8e8] sm:$0xff] %v2972
  %3339 = vst [vmem:[%s2 + $0x8f0] sm:$0xff] %v2973
  %3340 = vst [vmem:[%s2 + $0x8f8] sm:$0xff] %v2974
  %3341 = vst [vmem:[%s2 + $0x900] sm:$0xff] %v2975
  %3342 = vst [vmem:[%s2 + $0x908] sm:$0xff] %v2976
  %3343 = vst [vmem:[%s2 + $0x910] sm:$0xff] %v2977
  %3344 = vst [vmem:[%s2 + $0x918] sm:$0xff] %v2978
  %3345 = vst [vmem:[%s2 + $0x920] sm:$0xff] %v2979
  %3346 = vst [vmem:[%s2 + $0x928] sm:$0xff] %v2980
  %3347 = vst [vmem:[%s2 + $0x930] sm:$0xff] %v2981
  %3348 = vst [vmem:[%s2 + $0x938] sm:$0xff] %v2982
  %3349 = vst [vmem:[%s2 + $0x940] sm:$0xff] %v2983
  %3350 = vst [vmem:[%s2 + $0x948] sm:$0xff] %v2984
  %3351 = vst [vmem:[%s2 + $0x950] sm:$0xff] %v2985
  %3352 = vst [vmem:[%s2 + $0x958] sm:$0xff] %v2986
  %3353 = vst [vmem:[%s2 + $0x960] sm:$0xff] %v2987
  %3354 = vst [vmem:[%s2 + $0x968] sm:$0xff] %v2988
  %3355 = vst [vmem:[%s2 + $0x970] sm:$0xff] %v2989
  %3356 = vst [vmem:[%s2 + $0x978] sm:$0xff] %v2990
  %3357 = vst [vmem:[%s2 + $0x980] sm:$0xff] %v2991
  %3358 = vst [vmem:[%s2 + $0x988] sm:$0xff] %v2992
  %3359 = vst [vmem:[%s2 + $0x990] sm:$0xff] %v2993
  %3360 = vst [vmem:[%s2 + $0x998] sm:$0xff] %v2994
  %3361 = vst [vmem:[%s2 + $0x9a0] sm:$0xff] %v2995
  %3362 = vst [vmem:[%s2 + $0x9a8] sm:$0xff] %v2996
  %3363 = vst [vmem:[%s2 + $0x9b0] sm:$0xff] %v2997
  %3364 = vst [vmem:[%s2 + $0x9b8] sm:$0xff] %v2998
  %3365 = vst [vmem:[%s2 + $0x9c0] sm:$0xff] %v2999
  %3366 = vst [vmem:[%s2 + $0x9c8] sm:$0xff] %v3000
  %3367 = vst [vmem:[%s2 + $0x9d0] sm:$0xff] %v3001
  %3368 = vst [vmem:[%s2 + $0x9d8] sm:$0xff] %v3002
  %3369 = vst [vmem:[%s2 + $0x9e0] sm:$0xff] %v3003
  %3370 = vst [vmem:[%s2 + $0x9e8] sm:$0xff] %v3004
  %3371 = vst [vmem:[%s2 + $0x9f0] sm:$0xff] %v3005
  %3372 = vst [vmem:[%s2 + $0x9f8] sm:$0xff] %v3006
  %3373 = vst [vmem:[%s2 + $0xa00] sm:$0xff] %v3007
  %3374 = vst [vmem:[%s2 + $0xa08] sm:$0xff] %v3008
  %3375 = vst [vmem:[%s2 + $0xa10] sm:$0xff] %v3009
  %3376 = vst [vmem:[%s2 + $0xa18] sm:$0xff] %v3010
  %3377 = vst [vmem:[%s2 + $0xa20] sm:$0xff] %v3011
  %3378 = vst [vmem:[%s2 + $0xa28] sm:$0xff] %v3012
  %3379 = vst [vmem:[%s2 + $0xa30] sm:$0xff] %v3013
  %3380 = vst [vmem:[%s2 + $0xa38] sm:$0xff] %v3014
  %3381 = vst [vmem:[%s2 + $0xa40] sm:$0xff] %v3015
  %3382 = vst [vmem:[%s2 + $0xa48] sm:$0xff] %v3016
  %3383 = vst [vmem:[%s2 + $0xa50] sm:$0xff] %v3017
  %3384 = vst [vmem:[%s2 + $0xa58] sm:$0xff] %v3018
  %3385 = vst [vmem:[%s2 + $0xa60] sm:$0xff] %v3019
  %3386 = vst [vmem:[%s2 + $0xa68] sm:$0xff] %v3020
  %3387 = vst [vmem:[%s2 + $0xa70] sm:$0xff] %v3021
  %3388 = vst [vmem:[%s2 + $0xa78] sm:$0xff] %v3022
  %3389 = vst [vmem:[%s2 + $0xa80] sm:$0xff] %v3023
  %3390 = vst [vmem:[%s2 + $0xa88] sm:$0xff] %v3024
  %3391 = vst [vmem:[%s2 + $0xa90] sm:$0xff] %v3025
  %3392 = vst [vmem:[%s2 + $0xa98] sm:$0xff] %v3026
  %3393 = vst [vmem:[%s2 + $0xaa0] sm:$0xff] %v3027
  %3394 = vst [vmem:[%s2 + $0xaa8] sm:$0xff] %v3028
  %3395 = vst [vmem:[%s2 + $0xab0] sm:$0xff] %v3029
  %3396 = vst [vmem:[%s2 + $0xab8] sm:$0xff] %v3030
  %3397 = vst [vmem:[%s2 + $0xac0] sm:$0xff] %v3031
  %3398 = vst [vmem:[%s2 + $0xac8] sm:$0xff] %v3032
  %3399 = vst [vmem:[%s2 + $0xad0] sm:$0xff] %v3033
  %3400 = vst [vmem:[%s2 + $0xad8] sm:$0xff] %v3034
  %3401 = vst [vmem:[%s2 + $0xae0] sm:$0xff] %v3035
  %3402 = vst [vmem:[%s2 + $0xae8] sm:$0xff] %v3036
  %3403 = vst [vmem:[%s2 + $0xaf0] sm:$0xff] %v3037
  %3404 = vst [vmem:[%s2 + $0xaf8] sm:$0xff] %v3038
  %3405 = vst [vmem:[%s2 + $0xb00] sm:$0xff] %v3039
  %3406 = vst [vmem:[%s2 + $0xb08] sm:$0xff] %v3040
  %3407 = vst [vmem:[%s2 + $0xb10] sm:$0xff] %v3041
  %3408 = vst [vmem:[%s2 + $0xb18] sm:$0xff] %v3042
  %3409 = vst [vmem:[%s2 + $0xb20] sm:$0xff] %v3043
  %3410 = vst [vmem:[%s2 + $0xb28] sm:$0xff] %v3044
  %3411 = vst [vmem:[%s2 + $0xb30] sm:$0xff] %v3045
  %3412 = vst [vmem:[%s2 + $0xb38] sm:$0xff] %v3046
  %3413 = vst [vmem:[%s2 + $0xb40] sm:$0xff] %v3047
  %3414 = vst [vmem:[%s2 + $0xb48] sm:$0xff] %v3048
  %3415 = vst [vmem:[%s2 + $0xb50] sm:$0xff] %v3049
  %3416 = vst [vmem:[%s2 + $0xb58] sm:$0xff] %v3050
  %3417 = vst [vmem:[%s2 + $0xb60] sm:$0xf] %v3051
  %3418 = vst [vmem:[%s2 + $0xb68] sm:$0xf] %v3052
  // Predicated region
  $region10: #{module_forward.1} parent=0 // pred_check
    _
  $region11: #{module_forward.1} parent=0 // pred_check_branch
    %3420 = sbr.rel (0) target = $region13
  $region12: #{module_forward.1} parent=0 // pred_region
    _
  $region13: #{module_forward.1} parent=0 // pred_fallthru
    _
  // Predicated region
  $region14: #{module_forward.1} parent=0 // pred_check
    _
  $region15: #{module_forward.1} parent=0 // pred_check_branch
    %3422 = sbr.rel (0) target = $region17
  $region16: #{module_forward.1} parent=0 // pred_region
    _
  $region17: #{module_forward.1} parent=0 // pred_fallthru
    _

</llo_original>
